<compile_context>
chip_gen: v7x
topology: tpu7x:2x2x1
jax: 0.10.0
libtpu: 0.0.40
codegen_flags: <defaults>
</compile_context>

<pallas_src>
import jax
import jax.numpy as jnp
from jax.experimental import pallas as pl
from jax.experimental.pallas import tpu as pltpu

EPS = 1e-5


def _round_up(x, m):
    return ((x + m - 1) // m) * m


def _cdiv(a, b):
    return (a + b - 1) // b


def _default_vmem_limit_bytes():
    """~75% of physical VMEM, capped at 100 MiB (96 MiB v5e/v6e, 48 MiB v7x)."""
    cap = None
    try:
        cap = int(pltpu.get_tpu_info().vmem_capacity_bytes)
    except Exception:
        cap = None
    if not cap or cap <= 0:
        cap = 64 << 20  # conservative: v7x per-TensorCore physical VMEM
    return min((cap * 3) // 4, 100 << 20)


def _ln_mix(res_f32, gamma_f32, beta_f32, w, b_f32):
    """fp32 LayerNorm (two-pass stats) + dense mixer on the MXU."""
    mean = jnp.mean(res_f32, axis=-1, keepdims=True)
    centered = res_f32 - mean
    var = jnp.mean(centered * centered, axis=-1, keepdims=True)
    normed = centered * jax.lax.rsqrt(var + EPS)
    y = normed * gamma_f32 + beta_f32
    # MXU operands in the weight's dtype (bf16 doubles throughput on v6e/v7x);
    # accumulate in fp32.
    h = jnp.dot(y.astype(w.dtype), w, preferred_element_type=jnp.float32)
    return h + b_f32


def _block_kernel(h_ref, r_ref, gamma_ref, beta_ref, w_ref, bmix_ref,
                  out_h_ref, out_r_ref):
    # h_ref, r_ref: (TM, D) tiles in their native dtype.
    res = h_ref[...].astype(jnp.float32) + r_ref[...].astype(jnp.float32)
    out_r_ref[...] = res                                   # residual_in_fp32
    h = _ln_mix(res,
                gamma_ref[...].astype(jnp.float32),
                beta_ref[...].astype(jnp.float32),
                w_ref[...],
                bmix_ref[...].astype(jnp.float32))
    out_h_ref[...] = h.astype(out_h_ref.dtype)


def _block_kernel_nores(h_ref, gamma_ref, beta_ref, w_ref, bmix_ref,
                        out_h_ref, out_r_ref):
    # First-block variant: no residual input stream at all.
    res = h_ref[...].astype(jnp.float32)
    out_r_ref[...] = res
    h = _ln_mix(res,
                gamma_ref[...].astype(jnp.float32),
                beta_ref[...].astype(jnp.float32),
                w_ref[...],
                bmix_ref[...].astype(jnp.float32))
    out_h_ref[...] = h.astype(out_h_ref.dtype)


def block_forward(hidden_states, residual, gamma, beta, w_mix, b_mix,
                  *, tile_rows=1024, vmem_limit_bytes=None):
    """hidden_states, residual: (B, L, D). Returns (hidden_states, residual_fp32)."""
    B, L, D = hidden_states.shape
    R = B * L
    out_dtype = hidden_states.dtype

    # Large row tile (amortizes per-step pipeline overhead on this HBM-bound
    # kernel), multiple of 8, and clamped so there are >= 2 grid steps whenever
    # possible (keeps both v7x TensorCores busy).  Ragged R is handled by
    # Pallas' partial-last-block masking -- no wrapper pad / slice passes.
    tm = min(_round_up(tile_rows, 8), _round_up(_cdiv(R, 2), 8))
    n_tiles = _cdiv(R, tm)

    if vmem_limit_bytes is None:
        vmem_limit_bytes = _default_vmem_limit_bytes()

    h2 = hidden_states.reshape(R, D)
    r2 = residual.reshape(R, D) if residual is not None else None
    gamma2 = gamma.reshape(1, D).astype(jnp.float32)
    beta2 = beta.reshape(1, D).astype(jnp.float32)
    bmix2 = b_mix.reshape(1, D).astype(jnp.float32)

    row_in_spec = pl.BlockSpec((tm, D), lambda i: (i, 0))
    out_shapes = (jax.ShapeDtypeStruct((R, D), out_dtype),    # mixer output
                  jax.ShapeDtypeStruct((R, D), jnp.float32))  # residual fp32
    out_specs = (pl.BlockSpec((tm, D), lambda i: (i, 0)),
                 pl.BlockSpec((tm, D), lambda i: (i, 0)))
    cparams = pltpu.CompilerParams(dimension_semantics=("parallel",),
                                   vmem_limit_bytes=vmem_limit_bytes)

    def _const_spec(shape, single_buffer):
        # Grid-invariant operand (weight / gamma / beta / bias).
        idx = lambda i: (0,) * len(shape)
        if single_buffer:
            return pl.BlockSpec(shape, idx, pipeline_mode=pl.Buffered(1))
        return pl.BlockSpec(shape, idx)

    def _run(single_buffer):
        vec_spec = _const_spec((1, D), single_buffer)
        w_spec = _const_spec((D, D), single_buffer)
        if residual is None:
            kernel = _block_kernel_nores
            in_specs = [row_in_spec, vec_spec, vec_spec, w_spec, vec_spec]
            args = (h2, gamma2, beta2, w_mix, bmix2)
        else:
            kernel = _block_kernel
            in_specs = [row_in_spec, row_in_spec, vec_spec, vec_spec,
                        w_spec, vec_spec]
            args = (h2, r2, gamma2, beta2, w_mix, bmix2)
        return pl.pallas_call(
            kernel,
            out_shape=out_shapes,
            grid_spec=pltpu.PrefetchScalarGridSpec(
                num_scalar_prefetch=0,
                grid=(n_tiles,),
                in_specs=in_specs,
                out_specs=out_specs),
            compiler_params=cparams,
        )(*args)

    try:
        out_h, out_r = _run(single_buffer=True)
    except Exception:
        # pipeline_mode=pl.Buffered(1) not supported by this jax build;
        # fall back to default double-buffered grid-invariant operands.
        out_h, out_r = _run(single_buffer=False)

    return out_h.reshape(B, L, D), out_r.reshape(B, L, D)


def _reference(hidden_states, residual, gamma, beta, w_mix, b_mix):
    h = hidden_states.astype(jnp.float32)
    res = h + residual.astype(jnp.float32) if residual is not None else h
    mean = jnp.mean(res, axis=-1, keepdims=True)
    var = jnp.mean((res - mean) ** 2, axis=-1, keepdims=True)
    y = (res - mean) * jax.lax.rsqrt(var + EPS) * gamma.astype(jnp.float32) \
        + beta.astype(jnp.float32)
    out_h = (jnp.dot(y.astype(w_mix.dtype), w_mix,
                     preferred_element_type=jnp.float32)
             + b_mix.astype(jnp.float32)).astype(hidden_states.dtype)
    return out_h, res


if __name__ == "__main__":
    B, L, D = 2, 64, 128
    key = jax.random.PRNGKey(0)
    k1, k2, k3, k4 = jax.random.split(key, 4)

    hidden_states = jax.random.normal(k1, (B, L, D), dtype=jnp.float32)
    residual = jax.random.normal(k2, (B, L, D), dtype=jnp.float32)
    gamma = jnp.ones((D,), jnp.float32)
    beta = jnp.zeros((D,), jnp.float32)
    w_mix = jax.random.normal(k3, (D, D), dtype=jnp.float32) * (1.0 / D ** 0.5)
    b_mix = jax.random.normal(k4, (D,), dtype=jnp.float32) * 0.01

    # --- fp32, with residual ---
    out_h, out_r = block_forward(hidden_states, residual, gamma, beta,
                                 w_mix, b_mix)
    jax.block_until_ready((out_h, out_r))
    ref_h, ref_r = _reference(hidden_states, residual, gamma, beta, w_mix, b_mix)
    assert jnp.allclose(out_h, ref_h, atol=1e-4, rtol=1e-4)
    assert jnp.allclose(out_r, ref_r, atol=1e-5, rtol=1e-5)

    # --- fp32, first block (residual=None, dedicated kernel, no zero stream) ---
    out_h0, out_r0 = block_forward(hidden_states, None, gamma, beta,
                                   w_mix, b_mix)
    jax.block_until_ready((out_h0, out_r0))
    ref_h0, ref_r0 = _reference(hidden_states, None, gamma, beta, w_mix, b_mix)
    assert jnp.allclose(out_h0, ref_h0, atol=1e-4, rtol=1e-4)
    assert jnp.allclose(out_r0, ref_r0, atol=1e-5, rtol=1e-5)

    # --- bf16 inputs + bf16 weight (halved HBM traffic), fp32 LN / acc / residual ---
    h_bf = hidden_states.astype(jnp.bfloat16)
    r_bf = residual.astype(jnp.bfloat16)
    w_bf = w_mix.astype(jnp.bfloat16)
    out_hb, out_rb = block_forward(h_bf, r_bf, gamma, beta, w_bf, b_mix)
    jax.block_until_ready((out_hb, out_rb))
    ref_hb, ref_rb = _reference(h_bf, r_bf, gamma, beta, w_bf, b_mix)
    assert out_hb.dtype == jnp.bfloat16 and out_rb.dtype == jnp.float32
    assert jnp.allclose(out_hb.astype(jnp.float32), ref_hb.astype(jnp.float32),
                        atol=5e-2, rtol=5e-2)
    assert jnp.allclose(out_rb, ref_rb, atol=1e-5, rtol=1e-5)

    # --- ragged row count: exercises Pallas' masked partial last block
    #     (no wrapper-side pad / slice passes any more) ---
    B2, L2 = 2, 9
    h3 = jax.random.normal(k1, (B2, L2, D), dtype=jnp.float32)
    r3 = jax.random.normal(k2, (B2, L2, D), dtype=jnp.float32)
    out_h3, out_r3 = block_forward(h3, r3, gamma, beta, w_mix, b_mix)
    jax.block_until_ready((out_h3, out_r3))
    ref_h3, ref_r3 = _reference(h3, r3, gamma, beta, w_mix, b_mix)
    assert jnp.allclose(out_h3, ref_h3, atol=1e-4, rtol=1e-4)
    assert jnp.allclose(out_r3, ref_r3, atol=1e-5, rtol=1e-5)

    print("KERNEL_OK")
</pallas_src>

<mosaic_0001>
module attributes {stable_mosaic.version = 11 : i64} {
  func.func @_block_kernel(%arg0: i32, %arg1: memref<64x128xf32, #tpu.memory_space<vmem>>, %arg2: memref<64x128xf32, #tpu.memory_space<vmem>>, %arg3: memref<1x128xf32, #tpu.memory_space<vmem>>, %arg4: memref<1x128xf32, #tpu.memory_space<vmem>>, %arg5: memref<128x128xf32, #tpu.memory_space<vmem>>, %arg6: memref<1x128xf32, #tpu.memory_space<vmem>>, %arg7: memref<64x128xf32, #tpu.memory_space<vmem>>, %arg8: memref<64x128xf32, #tpu.memory_space<vmem>>) attributes {dimension_semantics = [#tpu.dimension_semantics<parallel>], iteration_bounds = array<i64: 2>, scalar_prefetch = 0 : i64, scratch_operands = 0 : i64, tpu.core_type = #tpu.core_type<tc>, window_params = [{transform_indices = @transform_0, window_bounds = array<i64: 64, 128>}, {transform_indices = @transform_1, window_bounds = array<i64: 64, 128>}, {pipeline_mode = #tpu.pipeline_mode<synchronous>, transform_indices = @transform_2, window_bounds = array<i64: 1, 128>}, {pipeline_mode = #tpu.pipeline_mode<synchronous>, transform_indices = @transform_3, window_bounds = array<i64: 1, 128>}, {pipeline_mode = #tpu.pipeline_mode<synchronous>, transform_indices = @transform_4, window_bounds = array<i64: 128, 128>}, {pipeline_mode = #tpu.pipeline_mode<synchronous>, transform_indices = @transform_5, window_bounds = array<i64: 1, 128>}, {transform_indices = @transform_6, window_bounds = array<i64: 64, 128>}, {transform_indices = @transform_7, window_bounds = array<i64: 64, 128>}]} {
    %c0 = arith.constant 0 : index
    %c0_0 = arith.constant 0 : index
    %0 = vector.load %arg1[%c0, %c0_0] : memref<64x128xf32, #tpu.memory_space<vmem>>, vector<64x128xf32>
    %c0_1 = arith.constant 0 : index
    %c0_2 = arith.constant 0 : index
    %1 = vector.load %arg2[%c0_1, %c0_2] : memref<64x128xf32, #tpu.memory_space<vmem>>, vector<64x128xf32>
    %2 = arith.addf %0, %1 : vector<64x128xf32>
    %c0_3 = arith.constant 0 : index
    %c0_4 = arith.constant 0 : index
    %3 = vector.load %arg8[%c0_3, %c0_4] : memref<64x128xf32, #tpu.memory_space<vmem>>, vector<64x128xf32>
    tpu.vector_store %arg8[%c0_3, %c0_4], %2 {strides = array<i32>} : memref<64x128xf32, #tpu.memory_space<vmem>>, vector<64x128xf32>,
    %c0_5 = arith.constant 0 : index
    %c0_6 = arith.constant 0 : index
    %4 = vector.load %arg3[%c0_5, %c0_6] : memref<1x128xf32, #tpu.memory_space<vmem>>, vector<1x128xf32>
    %c0_7 = arith.constant 0 : index
    %c0_8 = arith.constant 0 : index
    %5 = vector.load %arg4[%c0_7, %c0_8] : memref<1x128xf32, #tpu.memory_space<vmem>>, vector<1x128xf32>
    %c0_9 = arith.constant 0 : index
    %c0_10 = arith.constant 0 : index
    %6 = vector.load %arg5[%c0_9, %c0_10] : memref<128x128xf32, #tpu.memory_space<vmem>>, vector<128x128xf32>
    %c0_11 = arith.constant 0 : index
    %c0_12 = arith.constant 0 : index
    %7 = vector.load %arg6[%c0_11, %c0_12] : memref<1x128xf32, #tpu.memory_space<vmem>>, vector<1x128xf32>
    %cst = arith.constant dense<0.000000e+00> : vector<64xf32>
    %8 = vector.multi_reduction <add>, %2, %cst [1] : vector<64x128xf32> to vector<64xf32>
    %9 = vector.shape_cast %8 : vector<64xf32> to vector<64x1xf32>
    %cst_13 = arith.constant 1.280000e+02 : f32
    %10 = vector.broadcast %cst_13 : f32 to vector<64x1xf32>
    %11 = arith.divf %9, %10 : vector<64x1xf32>
    %12 = vector.broadcast %11 : vector<64x1xf32> to vector<64x128xf32>
    %13 = arith.subf %2, %12 : vector<64x128xf32>
    %14 = arith.mulf %13, %13 : vector<64x128xf32>
    %cst_14 = arith.constant dense<0.000000e+00> : vector<64xf32>
    %15 = vector.multi_reduction <add>, %14, %cst_14 [1] : vector<64x128xf32> to vector<64xf32>
    %16 = vector.shape_cast %15 : vector<64xf32> to vector<64x1xf32>
    %cst_15 = arith.constant 1.280000e+02 : f32
    %17 = vector.broadcast %cst_15 : f32 to vector<64x1xf32>
    %18 = arith.divf %16, %17 : vector<64x1xf32>
    %cst_16 = arith.constant 9.99999974E-6 : f32
    %19 = vector.broadcast %cst_16 : f32 to vector<64x1xf32>
    %20 = arith.addf %18, %19 : vector<64x1xf32>
    %21 = math.rsqrt %20 : vector<64x1xf32>
    %22 = vector.broadcast %21 : vector<64x1xf32> to vector<64x128xf32>
    %23 = arith.mulf %13, %22 : vector<64x128xf32>
    %24 = vector.broadcast %4 : vector<1x128xf32> to vector<64x128xf32>
    %25 = arith.mulf %23, %24 : vector<64x128xf32>
    %26 = vector.broadcast %5 : vector<1x128xf32> to vector<64x128xf32>
    %27 = arith.addf %25, %26 : vector<64x128xf32>
    %cst_17 = arith.constant dense<0.000000e+00> : vector<64x128xf32>
    %28 = tpu.matmul %27, %6, %cst_17 {dimension_numbers = #tpu.dot_dimension_numbers<[1], [0], [0], [1], [0, 0, 1, 1], [], []>} : vector<64x128xf32>, vector<128x128xf32>, vector<64x128xf32> -> vector<64x128xf32>
    %29 = vector.broadcast %7 : vector<1x128xf32> to vector<64x128xf32>
    %30 = arith.addf %28, %29 : vector<64x128xf32>
    %c0_18 = arith.constant 0 : index
    %c0_19 = arith.constant 0 : index
    %31 = vector.load %arg7[%c0_18, %c0_19] : memref<64x128xf32, #tpu.memory_space<vmem>>, vector<64x128xf32>
    tpu.vector_store %arg7[%c0_18, %c0_19], %30 {strides = array<i32>} : memref<64x128xf32, #tpu.memory_space<vmem>>, vector<64x128xf32>,
    return
  }
  func.func @transform_0(%arg0: i32) -> (i32, i32) {
    %c0_i32 = arith.constant 0 : i32
    %c0_i32_0 = arith.constant 0 : i32
    return %arg0, %c0_i32 : i32, i32
  }
  func.func @transform_1(%arg0: i32) -> (i32, i32) {
    %c0_i32 = arith.constant 0 : i32
    %c0_i32_0 = arith.constant 0 : i32
    return %arg0, %c0_i32 : i32, i32
  }
  func.func @transform_2(%arg0: i32) -> (i32, i32) {
    %c0_i32 = arith.constant 0 : i32
    %c0_i32_0 = arith.constant 0 : i32
    %c0_i32_1 = arith.constant 0 : i32
    return %c0_i32, %c0_i32_0 : i32, i32
  }
  func.func @transform_3(%arg0: i32) -> (i32, i32) {
    %c0_i32 = arith.constant 0 : i32
    %c0_i32_0 = arith.constant 0 : i32
    %c0_i32_1 = arith.constant 0 : i32
    return %c0_i32, %c0_i32_0 : i32, i32
  }
  func.func @transform_4(%arg0: i32) -> (i32, i32) {
    %c0_i32 = arith.constant 0 : i32
    %c0_i32_0 = arith.constant 0 : i32
    %c0_i32_1 = arith.constant 0 : i32
    return %c0_i32, %c0_i32_0 : i32, i32
  }
  func.func @transform_5(%arg0: i32) -> (i32, i32) {
    %c0_i32 = arith.constant 0 : i32
    %c0_i32_0 = arith.constant 0 : i32
    %c0_i32_1 = arith.constant 0 : i32
    return %c0_i32, %c0_i32_0 : i32, i32
  }
  func.func @transform_6(%arg0: i32) -> (i32, i32) {
    %c0_i32 = arith.constant 0 : i32
    %c0_i32_0 = arith.constant 0 : i32
    return %arg0, %c0_i32 : i32, i32
  }
  func.func @transform_7(%arg0: i32) -> (i32, i32) {
    %c0_i32 = arith.constant 0 : i32
    %c0_i32_0 = arith.constant 0 : i32
    return %arg0, %c0_i32 : i32, i32
  }
}

module attributes {stable_mosaic.version = 11 : i64} {
  func.func @_block_kernel(%arg0: i32, %arg1: memref<64x128xf32, #tpu.memory_space<vmem>>, %arg2: memref<64x128xf32, #tpu.memory_space<vmem>>, %arg3: memref<1x128xf32, #tpu.memory_space<vmem>>, %arg4: memref<1x128xf32, #tpu.memory_space<vmem>>, %arg5: memref<128x128xf32, #tpu.memory_space<vmem>>, %arg6: memref<1x128xf32, #tpu.memory_space<vmem>>, %arg7: memref<64x128xf32, #tpu.memory_space<vmem>>, %arg8: memref<64x128xf32, #tpu.memory_space<vmem>>) attributes {dimension_semantics = [#tpu.dimension_semantics<parallel>], iteration_bounds = array<i64: 2>, scalar_prefetch = 0 : i64, scratch_operands = 0 : i64, tpu.core_type = #tpu.core_type<tc>, window_params = [{transform_indices = @transform_0, window_bounds = array<i64: 64, 128>}, {transform_indices = @transform_1, window_bounds = array<i64: 64, 128>}, {pipeline_mode = #tpu.pipeline_mode<synchronous>, transform_indices = @transform_2, window_bounds = array<i64: 1, 128>}, {pipeline_mode = #tpu.pipeline_mode<synchronous>, transform_indices = @transform_3, window_bounds = array<i64: 1, 128>}, {pipeline_mode = #tpu.pipeline_mode<synchronous>, transform_indices = @transform_4, window_bounds = array<i64: 128, 128>}, {pipeline_mode = #tpu.pipeline_mode<synchronous>, transform_indices = @transform_5, window_bounds = array<i64: 1, 128>}, {transform_indices = @transform_6, window_bounds = array<i64: 64, 128>}, {transform_indices = @transform_7, window_bounds = array<i64: 64, 128>}]} {
    %c0 = arith.constant 0 : index
    %c0_0 = arith.constant 0 : index
    %0 = vector.load %arg1[%c0, %c0_0] : memref<64x128xf32, #tpu.memory_space<vmem>>, vector<64x128xf32>
    %c0_1 = arith.constant 0 : index
    %c0_2 = arith.constant 0 : index
    %1 = vector.load %arg2[%c0_1, %c0_2] : memref<64x128xf32, #tpu.memory_space<vmem>>, vector<64x128xf32>
    %2 = arith.addf %0, %1 : vector<64x128xf32>
    %c0_3 = arith.constant 0 : index
    %c0_4 = arith.constant 0 : index
    %3 = vector.load %arg8[%c0_3, %c0_4] : memref<64x128xf32, #tpu.memory_space<vmem>>, vector<64x128xf32>
    tpu.vector_store %arg8[%c0_3, %c0_4], %2 {strides = array<i32>} : memref<64x128xf32, #tpu.memory_space<vmem>>, vector<64x128xf32>,
    %c0_5 = arith.constant 0 : index
    %c0_6 = arith.constant 0 : index
    %4 = vector.load %arg3[%c0_5, %c0_6] : memref<1x128xf32, #tpu.memory_space<vmem>>, vector<1x128xf32>
    %c0_7 = arith.constant 0 : index
    %c0_8 = arith.constant 0 : index
    %5 = vector.load %arg4[%c0_7, %c0_8] : memref<1x128xf32, #tpu.memory_space<vmem>>, vector<1x128xf32>
    %c0_9 = arith.constant 0 : index
    %c0_10 = arith.constant 0 : index
    %6 = vector.load %arg5[%c0_9, %c0_10] : memref<128x128xf32, #tpu.memory_space<vmem>>, vector<128x128xf32>
    %c0_11 = arith.constant 0 : index
    %c0_12 = arith.constant 0 : index
    %7 = vector.load %arg6[%c0_11, %c0_12] : memref<1x128xf32, #tpu.memory_space<vmem>>, vector<1x128xf32>
    %cst = arith.constant dense<0.000000e+00> : vector<64xf32>
    %8 = vector.multi_reduction <add>, %2, %cst [1] : vector<64x128xf32> to vector<64xf32>
    %9 = vector.shape_cast %8 : vector<64xf32> to vector<64x1xf32>
    %cst_13 = arith.constant 1.280000e+02 : f32
    %10 = vector.broadcast %cst_13 : f32 to vector<64x1xf32>
    %11 = arith.divf %9, %10 : vector<64x1xf32>
    %12 = vector.broadcast %11 : vector<64x1xf32> to vector<64x128xf32>
    %13 = arith.subf %2, %12 : vector<64x128xf32>
    %14 = arith.mulf %13, %13 : vector<64x128xf32>
    %cst_14 = arith.constant dense<0.000000e+00> : vector<64xf32>
    %15 = vector.multi_reduction <add>, %14, %cst_14 [1] : vector<64x128xf32> to vector<64xf32>
    %16 = vector.shape_cast %15 : vector<64xf32> to vector<64x1xf32>
    %cst_15 = arith.constant 1.280000e+02 : f32
    %17 = vector.broadcast %cst_15 : f32 to vector<64x1xf32>
    %18 = arith.divf %16, %17 : vector<64x1xf32>
    %cst_16 = arith.constant 9.99999974E-6 : f32
    %19 = vector.broadcast %cst_16 : f32 to vector<64x1xf32>
    %20 = arith.addf %18, %19 : vector<64x1xf32>
    %21 = math.rsqrt %20 : vector<64x1xf32>
    %22 = vector.broadcast %21 : vector<64x1xf32> to vector<64x128xf32>
    %23 = arith.mulf %13, %22 : vector<64x128xf32>
    %24 = vector.broadcast %4 : vector<1x128xf32> to vector<64x128xf32>
    %25 = arith.mulf %23, %24 : vector<64x128xf32>
    %26 = vector.broadcast %5 : vector<1x128xf32> to vector<64x128xf32>
    %27 = arith.addf %25, %26 : vector<64x128xf32>
    %cst_17 = arith.constant dense<0.000000e+00> : vector<64x128xf32>
    %28 = tpu.matmul %27, %6, %cst_17 {dimension_numbers = #tpu.dot_dimension_numbers<[1], [0], [0], [1], [0, 0, 1, 1], [], []>} : vector<64x128xf32>, vector<128x128xf32>, vector<64x128xf32> -> vector<64x128xf32>
    %29 = vector.broadcast %7 : vector<1x128xf32> to vector<64x128xf32>
    %30 = arith.addf %28, %29 : vector<64x128xf32>
    %c0_18 = arith.constant 0 : index
    %c0_19 = arith.constant 0 : index
    %31 = vector.load %arg7[%c0_18, %c0_19] : memref<64x128xf32, #tpu.memory_space<vmem>>, vector<64x128xf32>
    tpu.vector_store %arg7[%c0_18, %c0_19], %30 {strides = array<i32>} : memref<64x128xf32, #tpu.memory_space<vmem>>, vector<64x128xf32>,
    return
  }
  func.func @transform_0(%arg0: i32) -> (i32, i32) {
    %c0_i32 = arith.constant 0 : i32
    %c0_i32_0 = arith.constant 0 : i32
    return %arg0, %c0_i32 : i32, i32
  }
  func.func @transform_1(%arg0: i32) -> (i32, i32) {
    %c0_i32 = arith.constant 0 : i32
    %c0_i32_0 = arith.constant 0 : i32
    return %arg0, %c0_i32 : i32, i32
  }
  func.func @transform_2(%arg0: i32) -> (i32, i32) {
    %c0_i32 = arith.constant 0 : i32
    %c0_i32_0 = arith.constant 0 : i32
    %c0_i32_1 = arith.constant 0 : i32
    return %c0_i32, %c0_i32_0 : i32, i32
  }
  func.func @transform_3(%arg0: i32) -> (i32, i32) {
    %c0_i32 = arith.constant 0 : i32
    %c0_i32_0 = arith.constant 0 : i32
    %c0_i32_1 = arith.constant 0 : i32
    return %c0_i32, %c0_i32_0 : i32, i32
  }
  func.func @transform_4(%arg0: i32) -> (i32, i32) {
    %c0_i32 = arith.constant 0 : i32
    %c0_i32_0 = arith.constant 0 : i32
    %c0_i32_1 = arith.constant 0 : i32
    return %c0_i32, %c0_i32_0 : i32, i32
  }
  func.func @transform_5(%arg0: i32) -> (i32, i32) {
    %c0_i32 = arith.constant 0 : i32
    %c0_i32_0 = arith.constant 0 : i32
    %c0_i32_1 = arith.constant 0 : i32
    return %c0_i32, %c0_i32_0 : i32, i32
  }
  func.func @transform_6(%arg0: i32) -> (i32, i32) {
    %c0_i32 = arith.constant 0 : i32
    %c0_i32_0 = arith.constant 0 : i32
    return %arg0, %c0_i32 : i32, i32
  }
  func.func @transform_7(%arg0: i32) -> (i32, i32) {
    %c0_i32 = arith.constant 0 : i32
    %c0_i32_0 = arith.constant 0 : i32
    return %arg0, %c0_i32 : i32, i32
  }
}

</mosaic_0001>

<llo_original>
// kernel: tpu_custom_call.1
$region0: #{tpu_custom_call.1}
  #allocation0 [shape = 'u32[]', space=smem, size = 0x4, offset = 0x4, fixed_abs, tag = 'smem constant byte address 0x4 - core index']
  #allocation1 [shape = 'u32[144,128]{1,0:T(1,128)}', space=vmem, size = 0x12000, scoped, tag = 'internal scratch']
  %s0 = inlined_call_operand.hbm [shape: f32[128,128], index: 0, kind: input, shape index: {}]
  %s1 = inlined_call_operand.hbm [shape: f32[128,128], index: 1, kind: input, shape index: {}]
  %s2 = inlined_call_operand.vmem [shape: f32[1,128], index: 2, kind: input, shape index: {}]
  %s3 = inlined_call_operand.vmem [shape: f32[1,128], index: 3, kind: input, shape index: {}]
  %s4 = inlined_call_operand.hbm [shape: f32[128,128], index: 4, kind: input, shape index: {}]
  %s5 = inlined_call_operand.vmem [shape: f32[1,128], index: 5, kind: input, shape index: {}]
  %s6 = inlined_call_operand.hbm [shape: f32[128,128], index: 6, kind: output, shape index: {0}]
  %s7 = inlined_call_operand.hbm [shape: f32[128,128], index: 7, kind: output, shape index: {1}]
  %8 = xla_tuple %s6, %s7
  %s9 = sld [smem:[#allocation0]]
  $region77: #{tpu_custom_call.1} parent=0
    _
  %s11 = ssub.s32 1, %s9
  %s12 = scalar_select 0, %s11, %s9
  $region1: #{tpu_custom_call.1} parent=0
    #allocation2 [shape = 'u8[65536]{0}', space=vmem, size = 0x10000, scoped, tag = 'input window, operand 0']
    #allocation3 [shape = 's32[2]{0}', space=sflag, size = 0x8, scoped, tag = 'scoped memory for tpu_custom_call.1']
    #allocation4 [shape = 's32[2]{0}', space=sflag, size = 0x8, scoped, tag = 'scoped memory for tpu_custom_call.1']
    #allocation5 [shape = 'u8[65536]{0}', space=vmem, size = 0x10000, scoped, tag = 'input window, operand 1']
    #allocation6 [shape = 's32[2]{0}', space=sflag, size = 0x8, scoped, tag = 'scoped memory for tpu_custom_call.1']
    #allocation7 [shape = 'u8[65536]{0}', space=vmem, size = 0x10000, scoped, tag = 'input window, operand 4, single buffered']
    #allocation8 [shape = 'u8[65536]{0}', space=vmem, size = 0x10000, scoped, tag = 'output window, operand 0']
    #allocation9 [shape = 'u8[65536]{0}', space=vmem, size = 0x10000, scoped, tag = 'output window, operand 1']
    #allocation10 [shape = 's32[2]{0}', space=sflag, size = 0x8, scoped, tag = 'scoped memory for tpu_custom_call.1']
    %13 = vsyncpa [#allocation3], 0
    %s14 = scalar_lea.sflag [#allocation3], 1
    %15 = vsyncpa %s14, 0
    %16 = vsyncpa [#allocation6], 0
    %s17 = scalar_lea.sflag [#allocation6], 1
    %18 = vsyncpa %s17, 0
    %19 = vsyncpa [#allocation4], 0
    %s20 = scalar_lea.sflag [#allocation4], 1
    %21 = vsyncpa %s20, 0
    %22 = vsyncpa [#allocation10], 0
    %s23 = scalar_lea.sflag [#allocation10], 1
    %24 = vsyncpa %s23, 0
    loop: start=0, step=1, limit=4
    $region2: #{tpu_custom_call.1} parent=1 // loop_pre_header
      _
    $region3: #{tpu_custom_call.1} parent=1 // loop_header
      %s26 = sphi 0, %s30
      %p27 = scmp.ge.s32.totalorder %s26, 4
      %s36 = sphi 0, %s38
      %s39 = sphi 0, %s36
      %s40 = sphi 0, %s39
      %s56 = sphi 0, %s40
      %s62 = sphi 0, %s64
      %s65 = sphi 0, %s62
      %s66 = sphi 0, %s65
      %s82 = sphi 0, %s66
      %s86 = sphi 0, %s86
      %s88 = sphi 0, %s86
      %s89 = sphi 0, %s88
      %s103 = sphi 0, %s89
      %s107 = sphi 0, %s107
      %s109 = sphi 0, %s107
      %s110 = sphi 0, %s109
      %s124 = sphi 0, %s110
      %s128 = sphi 0, %s128
      %s130 = sphi 0, %s128
      %s131 = sphi 0, %s130
      %s145 = sphi 0, %s131
      %s149 = sphi 0, %s149
      %s151 = sphi 0, %s149
      %s152 = sphi 0, %s151
      %s166 = sphi 0, %s152
      %s172 = sphi 0, %s174
      %s175 = sphi 0, %s172
      %s176 = sphi 0, %s175
      %s192 = sphi 0, %s176
      %s198 = sphi 0, %s200
      %s201 = sphi 0, %s198
      %s202 = sphi 0, %s201
      %s218 = sphi 0, %s202
    $region4: #{tpu_custom_call.1} parent=1 // loop_header_branch
      %29 = sbr.rel (%p27) target = $region8
    $region5: #{tpu_custom_call.1} parent=1 // loop_body
      %s31 = ssub.s32 %s26, 1
      %s32 = ssub.s32 %s26, 2
      %s33 = sadd.s32 %s26, 1
      %s34 = ssub.s32 %s26, %s33
      %p35 = scmp.eq.s32.totalorder %s34, 0
      %s37 = sadd.s32 %s36, 1
      %s38 = scalar_select %p35, %s36, %s37
      %p41 = pneg %p35
      %p42 = scmp.eq.s32.totalorder %s26, 1
      %p43 = por %p41, %p42
      %p44 = scmp.ne.s32.totalorder %s36, %s39
      %p45 = scmp.eq.s32.totalorder %s26, 0
      %p46 = por %p44, %p45
      %p47 = scmp.ne.s32.totalorder %s36, %s39
      %p48 = scmp.eq.s32.totalorder %s31, 1
      %p49 = por %p47, %p48
      %p50 = scmp.ne.s32.totalorder %s39, %s40
      %p51 = scmp.eq.s32.totalorder %s31, 0
      %p52 = por %p50, %p51
      %p53 = scmp.ne.s32.totalorder %s39, %s40
      %p54 = scmp.eq.s32.totalorder %s32, 1
      %p55 = por %p53, %p54
      %p57 = scmp.ne.s32.totalorder %s40, %s56
      %p58 = scmp.eq.s32.totalorder %s32, 0
      %p59 = por %p57, %p58
      %s60 = ssub.s32 %s26, %s33
      %p61 = scmp.eq.s32.totalorder %s60, 0
      %s63 = sadd.s32 %s62, 1
      %s64 = scalar_select %p61, %s62, %s63
      %p67 = pneg %p61
      %p68 = scmp.eq.s32.totalorder %s26, 1
      %p69 = por %p67, %p68
      %p70 = scmp.ne.s32.totalorder %s62, %s65
      %p71 = scmp.eq.s32.totalorder %s26, 0
      %p72 = por %p70, %p71
      %p73 = scmp.ne.s32.totalorder %s62, %s65
      %p74 = scmp.eq.s32.totalorder %s31, 1
      %p75 = por %p73, %p74
      %p76 = scmp.ne.s32.totalorder %s65, %s66
      %p77 = scmp.eq.s32.totalorder %s31, 0
      %p78 = por %p76, %p77
      %p79 = scmp.ne.s32.totalorder %s65, %s66
      %p80 = scmp.eq.s32.totalorder %s32, 1
      %p81 = por %p79, %p80
      %p83 = scmp.ne.s32.totalorder %s66, %s82
      %p84 = scmp.eq.s32.totalorder %s32, 0
      %p85 = por %p83, %p84
      %s87 = sadd.s32 %s86, 1
      %p90 = scmp.eq.s32.totalorder %s26, 1
      %p91 = scmp.ne.s32.totalorder %s86, %s88
      %p92 = scmp.eq.s32.totalorder %s26, 0
      %p93 = por %p91, %p92
      %p94 = scmp.ne.s32.totalorder %s86, %s88
      %p95 = scmp.eq.s32.totalorder %s31, 1
      %p96 = por %p94, %p95
      %p97 = scmp.ne.s32.totalorder %s88, %s89
      %p98 = scmp.eq.s32.totalorder %s31, 0
      %p99 = por %p97, %p98
      %p100 = scmp.ne.s32.totalorder %s88, %s89
      %p101 = scmp.eq.s32.totalorder %s32, 1
      %p102 = por %p100, %p101
      %p104 = scmp.ne.s32.totalorder %s89, %s103
      %p105 = scmp.eq.s32.totalorder %s32, 0
      %p106 = por %p104, %p105
      %s108 = sadd.s32 %s107, 1
      %p111 = scmp.eq.s32.totalorder %s26, 1
      %p112 = scmp.ne.s32.totalorder %s107, %s109
      %p113 = scmp.eq.s32.totalorder %s26, 0
      %p114 = por %p112, %p113
      %p115 = scmp.ne.s32.totalorder %s107, %s109
      %p116 = scmp.eq.s32.totalorder %s31, 1
      %p117 = por %p115, %p116
      %p118 = scmp.ne.s32.totalorder %s109, %s110
      %p119 = scmp.eq.s32.totalorder %s31, 0
      %p120 = por %p118, %p119
      %p121 = scmp.ne.s32.totalorder %s109, %s110
      %p122 = scmp.eq.s32.totalorder %s32, 1
      %p123 = por %p121, %p122
      %p125 = scmp.ne.s32.totalorder %s110, %s124
      %p126 = scmp.eq.s32.totalorder %s32, 0
      %p127 = por %p125, %p126
      %s129 = sadd.s32 %s128, 1
      %p132 = scmp.eq.s32.totalorder %s26, 1
      %p133 = scmp.ne.s32.totalorder %s128, %s130
      %p134 = scmp.eq.s32.totalorder %s26, 0
      %p135 = por %p133, %p134
      %p136 = scmp.ne.s32.totalorder %s128, %s130
      %p137 = scmp.eq.s32.totalorder %s31, 1
      %p138 = por %p136, %p137
      %p139 = scmp.ne.s32.totalorder %s130, %s131
      %p140 = scmp.eq.s32.totalorder %s31, 0
      %p141 = por %p139, %p140
      %p142 = scmp.ne.s32.totalorder %s130, %s131
      %p143 = scmp.eq.s32.totalorder %s32, 1
      %p144 = por %p142, %p143
      %p146 = scmp.ne.s32.totalorder %s131, %s145
      %p147 = scmp.eq.s32.totalorder %s32, 0
      %p148 = por %p146, %p147
      %s150 = sadd.s32 %s149, 1
      %p153 = scmp.eq.s32.totalorder %s26, 1
      %p154 = scmp.ne.s32.totalorder %s149, %s151
      %p155 = scmp.eq.s32.totalorder %s26, 0
      %p156 = por %p154, %p155
      %p157 = scmp.ne.s32.totalorder %s149, %s151
      %p158 = scmp.eq.s32.totalorder %s31, 1
      %p159 = por %p157, %p158
      %p160 = scmp.ne.s32.totalorder %s151, %s152
      %p161 = scmp.eq.s32.totalorder %s31, 0
      %p162 = por %p160, %p161
      %p163 = scmp.ne.s32.totalorder %s151, %s152
      %p164 = scmp.eq.s32.totalorder %s32, 1
      %p165 = por %p163, %p164
      %p167 = scmp.ne.s32.totalorder %s152, %s166
      %p168 = scmp.eq.s32.totalorder %s32, 0
      %p169 = por %p167, %p168
      %s170 = ssub.s32 %s26, %s33
      %p171 = scmp.eq.s32.totalorder %s170, 0
      %s173 = sadd.s32 %s172, 1
      %s174 = scalar_select %p171, %s172, %s173
      %p177 = pneg %p171
      %p178 = scmp.eq.s32.totalorder %s26, 1
      %p179 = por %p177, %p178
      %p180 = scmp.ne.s32.totalorder %s172, %s175
      %p181 = scmp.eq.s32.totalorder %s26, 0
      %p182 = por %p180, %p181
      %p183 = scmp.ne.s32.totalorder %s172, %s175
      %p184 = scmp.eq.s32.totalorder %s31, 1
      %p185 = por %p183, %p184
      %p186 = scmp.ne.s32.totalorder %s175, %s176
      %p187 = scmp.eq.s32.totalorder %s31, 0
      %p188 = por %p186, %p187
      %p189 = scmp.ne.s32.totalorder %s175, %s176
      %p190 = scmp.eq.s32.totalorder %s32, 1
      %p191 = por %p189, %p190
      %p193 = scmp.ne.s32.totalorder %s176, %s192
      %p194 = scmp.eq.s32.totalorder %s32, 0
      %p195 = por %p193, %p194
      %s196 = ssub.s32 %s26, %s33
      %p197 = scmp.eq.s32.totalorder %s196, 0
      %s199 = sadd.s32 %s198, 1
      %s200 = scalar_select %p197, %s198, %s199
      %p203 = pneg %p197
      %p204 = scmp.eq.s32.totalorder %s26, 1
      %p205 = por %p203, %p204
      %p206 = scmp.ne.s32.totalorder %s198, %s201
      %p207 = scmp.eq.s32.totalorder %s26, 0
      %p208 = por %p206, %p207
      %p209 = scmp.ne.s32.totalorder %s198, %s201
      %p210 = scmp.eq.s32.totalorder %s31, 1
      %p211 = por %p209, %p210
      %p212 = scmp.ne.s32.totalorder %s201, %s202
      %p213 = scmp.eq.s32.totalorder %s31, 0
      %p214 = por %p212, %p213
      %p215 = scmp.ne.s32.totalorder %s201, %s202
      %p216 = scmp.eq.s32.totalorder %s32, 1
      %p217 = por %p215, %p216
      %p219 = scmp.ne.s32.totalorder %s202, %s218
      %p220 = scmp.eq.s32.totalorder %s32, 0
      %p221 = por %p219, %p220
      %p222 = scmp.le.s32.totalorder 1, %s26
      %p223 = scmp.lt.s32.totalorder %s26, 3
      %p224 = pnand %p222, %p223
      %p225 = pneg %p224
      // Predicated region
      $region9: #{tpu_custom_call.1} parent=5 // pred_check
        _
      $region10: #{tpu_custom_call.1} parent=5 // pred_check_branch
        %227 = sbr.rel (%p224) target = $region12
      $region11: #{tpu_custom_call.1} parent=5 // pred_region
        %s228 = ssub.s32 %s26, 1
        // Predicated region
        $region13: #{tpu_custom_call.1} parent=11 // pred_check
          %p229 = pneg %p99
        $region14: #{tpu_custom_call.1} parent=11 // pred_check_branch
          %231 = sbr.rel (%p229) target = $region16
        $region15: #{tpu_custom_call.1} parent=11 // pred_region
          _
        $region16: #{tpu_custom_call.1} parent=11 // pred_fallthru
          _
        // Predicated region
        $region17: #{tpu_custom_call.1} parent=11 // pred_check
          %p232 = pneg %p120
        $region18: #{tpu_custom_call.1} parent=11 // pred_check_branch
          %234 = sbr.rel (%p232) target = $region20
        $region19: #{tpu_custom_call.1} parent=11 // pred_region
          _
        $region20: #{tpu_custom_call.1} parent=11 // pred_fallthru
          _
        // Predicated region
        $region21: #{tpu_custom_call.1} parent=11 // pred_check
          %p235 = pneg %p141
        $region22: #{tpu_custom_call.1} parent=11 // pred_check_branch
          %237 = sbr.rel (%p235) target = $region24
        $region23: #{tpu_custom_call.1} parent=11 // pred_region
          %s239 = ssub.s32 2048, 2048
          %240 = vsyncadd [#allocation6], %s239
          %s241 = sshll.u32 [#allocation7], 4
          %s242 = int_to_ptr.vmem [resolvable:$true] %s241
          %247 = dma.hbm_to_vmem [thread:$0]  %s4, 2048, %s242, [#allocation6], 128, 128, 8
        $region24: #{tpu_custom_call.1} parent=11 // pred_fallthru
          _
        // Predicated region
        $region25: #{tpu_custom_call.1} parent=11 // pred_check
          %p248 = pneg %p162
        $region26: #{tpu_custom_call.1} parent=11 // pred_check_branch
          %250 = sbr.rel (%p248) target = $region28
        $region27: #{tpu_custom_call.1} parent=11 // pred_region
          _
        $region28: #{tpu_custom_call.1} parent=11 // pred_fallthru
          _
      $region12: #{tpu_custom_call.1} parent=5 // pred_fallthru
        _
      %p251 = scmp.lt.s32.totalorder %s26, 2
      // Predicated region
      $region29: #{tpu_custom_call.1} parent=5 // pred_check
        %p252 = pneg %p251
      $region30: #{tpu_custom_call.1} parent=5 // pred_check_branch
        %254 = sbr.rel (%p252) target = $region32
      $region31: #{tpu_custom_call.1} parent=5 // pred_region
        // Predicated region
        $region33: #{tpu_custom_call.1} parent=31 // pred_check
          %p255 = pneg %p46
        $region34: #{tpu_custom_call.1} parent=31 // pred_check_branch
          %257 = sbr.rel (%p255) target = $region36
        $region35: #{tpu_custom_call.1} parent=31 // pred_region
          %s258 = sand.u32 %s36, 1
          %s259 = scalar_lea.sflag [#allocation3], %s258
          %s260 = sand.u32 %s36, 1
          %s261 = smul.addr %s260, 64
          %s262 = scalar_lea.vmem [#allocation2], %s261
          %s263 = smul.u32 8, %s26
          %s265 = ssub.s32 1024, 1024
          %266 = vsyncadd %s259, %s265
          %s267 = smul.addr %s263, 128
          %s268 = scalar_lea.hbm %s0, %s267
          %s269 = sshll.u32 %s262, 4
          %s270 = int_to_ptr.vmem [resolvable:$true] %s269
          %275 = dma.hbm_to_vmem [thread:$0]  %s268, 1024, %s270, %s259, 128, 128, 8
        $region36: #{tpu_custom_call.1} parent=31 // pred_fallthru
          _
        // Predicated region
        $region37: #{tpu_custom_call.1} parent=31 // pred_check
          %p276 = pneg %p72
        $region38: #{tpu_custom_call.1} parent=31 // pred_check_branch
          %278 = sbr.rel (%p276) target = $region40
        $region39: #{tpu_custom_call.1} parent=31 // pred_region
          %s279 = sand.u32 %s26, 1
          %s280 = scalar_lea.sflag [#allocation6], %s279
          %s281 = sand.u32 %s62, 1
          %s282 = smul.addr %s281, 64
          %s283 = scalar_lea.vmem [#allocation5], %s282
          %s284 = smul.u32 8, %s26
          %s286 = ssub.s32 1024, 1024
          %287 = vsyncadd %s280, %s286
          %s288 = smul.addr %s284, 128
          %s289 = scalar_lea.hbm %s1, %s288
          %s290 = sshll.u32 %s283, 4
          %s291 = int_to_ptr.vmem [resolvable:$true] %s290
          %296 = dma.hbm_to_vmem [thread:$0]  %s289, 1024, %s291, %s280, 128, 128, 8
        $region40: #{tpu_custom_call.1} parent=31 // pred_fallthru
          _
      $region32: #{tpu_custom_call.1} parent=5 // pred_fallthru
        _
      %p297 = scmp.le.s32.totalorder 1, %s26
      %p298 = scmp.lt.s32.totalorder %s26, 3
      %p299 = pnand %p297, %p298
      %p300 = pneg %p299
      // Predicated region
      $region41: #{tpu_custom_call.1} parent=5 // pred_check
        _
      $region42: #{tpu_custom_call.1} parent=5 // pred_check_branch
        %302 = sbr.rel (%p299) target = $region44
      $region43: #{tpu_custom_call.1} parent=5 // pred_region
        %s303 = ssub.s32 %s26, 1
        %s304 = sand.u32 %s39, 1
        %s305 = scalar_lea.sflag [#allocation3], %s304
        %s306 = sand.u32 %s39, 1
        %s307 = smul.addr %s306, 64
        %s308 = scalar_lea.vmem [#allocation2], %s307
        // Predicated region
        $region45: #{tpu_custom_call.1} parent=43 // pred_check
          %p309 = pneg %p52
        $region46: #{tpu_custom_call.1} parent=43 // pred_check_branch
          %311 = sbr.rel (%p309) target = $region48
        $region47: #{tpu_custom_call.1} parent=43 // pred_region
          %312 = dma.done %s305, 1024
        $region48: #{tpu_custom_call.1} parent=43 // pred_fallthru
          _
        %s313 = sand.u32 %s31, 1
        %s314 = scalar_lea.sflag [#allocation6], %s313
        %s315 = sand.u32 %s65, 1
        %s316 = smul.addr %s315, 64
        %s317 = scalar_lea.vmem [#allocation5], %s316
        // Predicated region
        $region49: #{tpu_custom_call.1} parent=43 // pred_check
          %p318 = pneg %p78
        $region50: #{tpu_custom_call.1} parent=43 // pred_check_branch
          %320 = sbr.rel (%p318) target = $region52
        $region51: #{tpu_custom_call.1} parent=43 // pred_region
          %321 = dma.done %s314, 1024
        $region52: #{tpu_custom_call.1} parent=43 // pred_fallthru
          _
        // Predicated region
        $region53: #{tpu_custom_call.1} parent=43 // pred_check
          %p322 = pneg %p141
        $region54: #{tpu_custom_call.1} parent=43 // pred_check_branch
          %324 = sbr.rel (%p322) target = $region56
        $region55: #{tpu_custom_call.1} parent=43 // pred_region
          %325 = dma.done [#allocation6], 2048
        $region56: #{tpu_custom_call.1} parent=43 // pred_fallthru
          _
        %s326 = sand.u32 %s39, 1
        %s327 = scalar_lea.sflag [#allocation3], %s326
        %s328 = sand.u32 %s39, 1
        %s329 = smul.addr %s328, 64
        %s330 = scalar_lea.vmem [#allocation2], %s329
        %p331 = pneg %p52
        %p332 = pneg %p49
        %s333 = sand.u32 %s31, 1
        %s334 = scalar_lea.sflag [#allocation6], %s333
        %s335 = sand.u32 %s65, 1
        %s336 = smul.addr %s335, 64
        %s337 = scalar_lea.vmem [#allocation5], %s336
        %p338 = pneg %p78
        %p339 = pneg %p75
        %p340 = pneg %p99
        %p341 = pneg %p96
        %p342 = pneg %p120
        %p343 = pneg %p117
        %p344 = pneg %p141
        %p345 = pneg %p138
        %p346 = pneg %p162
        %p347 = pneg %p159
        %p348 = pneg %p188
        %p349 = pneg %p185
        %s350 = sand.u32 %s175, 1
        %s351 = scalar_lea.sflag [#allocation4], %s350
        %s352 = sand.u32 %s175, 1
        %s353 = smul.addr %s352, 64
        %s354 = scalar_lea.vmem [#allocation8], %s353
        %p355 = pneg %p214
        %p356 = pneg %p211
        %s357 = sand.u32 %s201, 1
        %s358 = scalar_lea.sflag [#allocation10], %s357
        %s359 = sand.u32 %s201, 1
        %s360 = smul.addr %s359, 64
        %s361 = scalar_lea.vmem [#allocation9], %s360
        %s362 = smul.u32 8, %s31
        %s363 = smul.u32 8, %s31
        %s364 = smul.u32 8, %s31
        %s365 = smul.u32 8, %s31
        %v366 = vld [vmem:[%s308] sm:$0xff]
        %v367 = vld [vmem:[%s308 + $0x8] sm:$0xff]
        %v368 = vld [vmem:[%s308 + $0x10] sm:$0xff]
        %v369 = vld [vmem:[%s308 + $0x18] sm:$0xff]
        %v370 = vld [vmem:[%s308 + $0x20] sm:$0xff]
        %v371 = vld [vmem:[%s308 + $0x28] sm:$0xff]
        %v372 = vld [vmem:[%s308 + $0x30] sm:$0xff]
        %v373 = vld [vmem:[%s308 + $0x38] sm:$0xff]
        %v374 = vld [vmem:[%s317] sm:$0xff]
        %v375 = vld [vmem:[%s317 + $0x8] sm:$0xff]
        %v376 = vld [vmem:[%s317 + $0x10] sm:$0xff]
        %v377 = vld [vmem:[%s317 + $0x18] sm:$0xff]
        %v378 = vld [vmem:[%s317 + $0x20] sm:$0xff]
        %v379 = vld [vmem:[%s317 + $0x28] sm:$0xff]
        %v380 = vld [vmem:[%s317 + $0x30] sm:$0xff]
        %v381 = vld [vmem:[%s317 + $0x38] sm:$0xff]
        %v382 = vadd.f32 %v366, %v374
        %v383 = vadd.f32 %v367, %v375
        %v384 = vadd.f32 %v368, %v376
        %v385 = vadd.f32 %v369, %v377
        %v386 = vadd.f32 %v370, %v378
        %v387 = vadd.f32 %v371, %v379
        %v388 = vadd.f32 %v372, %v380
        %v389 = vadd.f32 %v373, %v381
        %390 = vst [vmem:[%s361] sm:$0xff] %v382
        %391 = vst [vmem:[%s361 + $0x8] sm:$0xff] %v383
        %392 = vst [vmem:[%s361 + $0x10] sm:$0xff] %v384
        %393 = vst [vmem:[%s361 + $0x18] sm:$0xff] %v385
        %394 = vst [vmem:[%s361 + $0x20] sm:$0xff] %v386
        %395 = vst [vmem:[%s361 + $0x28] sm:$0xff] %v387
        %396 = vst [vmem:[%s361 + $0x30] sm:$0xff] %v388
        %397 = vst [vmem:[%s361 + $0x38] sm:$0xff] %v389
        %v398 = vld [vmem:[%s2] sm:$0x1]
        %v399 = vld [vmem:[%s3] sm:$0x1]
        %v400 = vld [vmem:[#allocation7] sm:$0xff]
        %v401 = vld [vmem:[#allocation7 + $0x8] sm:$0xff]
        %v402 = vld [vmem:[#allocation7 + $0x10] sm:$0xff]
        %v403 = vld [vmem:[#allocation7 + $0x18] sm:$0xff]
        %v404 = vld [vmem:[#allocation7 + $0x20] sm:$0xff]
        %v405 = vld [vmem:[#allocation7 + $0x28] sm:$0xff]
        %v406 = vld [vmem:[#allocation7 + $0x30] sm:$0xff]
        %v407 = vld [vmem:[#allocation7 + $0x38] sm:$0xff]
        %v408 = vld [vmem:[#allocation7 + $0x40] sm:$0xff]
        %v409 = vld [vmem:[#allocation7 + $0x48] sm:$0xff]
        %v410 = vld [vmem:[#allocation7 + $0x50] sm:$0xff]
        %v411 = vld [vmem:[#allocation7 + $0x58] sm:$0xff]
        %v412 = vld [vmem:[#allocation7 + $0x60] sm:$0xff]
        %v413 = vld [vmem:[#allocation7 + $0x68] sm:$0xff]
        %v414 = vld [vmem:[#allocation7 + $0x70] sm:$0xff]
        %v415 = vld [vmem:[#allocation7 + $0x78] sm:$0xff]
        %v416 = vld [vmem:[%s5] sm:$0x1]
        %417 = vadd.xlane.f32.xlu0 %v382
        %v418 = vpop.xlane.xlu0 %417
        %419 = vadd.xlane.f32.xlu0 %v383
        %v420 = vpop.xlane.xlu0 %419
        %421 = vadd.xlane.f32.xlu0 %v384
        %v422 = vpop.xlane.xlu0 %421
        %423 = vadd.xlane.f32.xlu0 %v385
        %v424 = vpop.xlane.xlu0 %423
        %425 = vadd.xlane.f32.xlu0 %v386
        %v426 = vpop.xlane.xlu0 %425
        %427 = vadd.xlane.f32.xlu0 %v387
        %v428 = vpop.xlane.xlu0 %427
        %429 = vadd.xlane.f32.xlu0 %v388
        %v430 = vpop.xlane.xlu0 %429
        %431 = vadd.xlane.f32.xlu0 %v389
        %v432 = vpop.xlane.xlu0 %431
        %v433 = vrcp.pop 128.0
        %v434 = vmul.f32 %v418, %v433
        %v435 = vmul.f32 %v420, %v433
        %v436 = vmul.f32 %v422, %v433
        %v437 = vmul.f32 %v424, %v433
        %v438 = vmul.f32 %v426, %v433
        %v439 = vmul.f32 %v428, %v433
        %v440 = vmul.f32 %v430, %v433
        %v441 = vmul.f32 %v432, %v433
        %v442 = vsub.f32 %v382, %v434
        %v443 = vsub.f32 %v383, %v435
        %v444 = vsub.f32 %v384, %v436
        %v445 = vsub.f32 %v385, %v437
        %v446 = vsub.f32 %v386, %v438
        %v447 = vsub.f32 %v387, %v439
        %v448 = vsub.f32 %v388, %v440
        %v449 = vsub.f32 %v389, %v441
        %v450 = vmul.f32 %v442, %v442
        %v451 = vmul.f32 %v443, %v443
        %v452 = vmul.f32 %v444, %v444
        %v453 = vmul.f32 %v445, %v445
        %v454 = vmul.f32 %v446, %v446
        %v455 = vmul.f32 %v447, %v447
        %v456 = vmul.f32 %v448, %v448
        %v457 = vmul.f32 %v449, %v449
        %458 = vadd.xlane.f32.xlu0 %v450
        %v459 = vpop.xlane.xlu0 %458
        %460 = vadd.xlane.f32.xlu0 %v451
        %v461 = vpop.xlane.xlu0 %460
        %462 = vadd.xlane.f32.xlu0 %v452
        %v463 = vpop.xlane.xlu0 %462
        %464 = vadd.xlane.f32.xlu0 %v453
        %v465 = vpop.xlane.xlu0 %464
        %466 = vadd.xlane.f32.xlu0 %v454
        %v467 = vpop.xlane.xlu0 %466
        %468 = vadd.xlane.f32.xlu0 %v455
        %v469 = vpop.xlane.xlu0 %468
        %470 = vadd.xlane.f32.xlu0 %v456
        %v471 = vpop.xlane.xlu0 %470
        %472 = vadd.xlane.f32.xlu0 %v457
        %v473 = vpop.xlane.xlu0 %472
        %v474 = vmul.f32 %v459, %v433
        %v475 = vmul.f32 %v461, %v433
        %v476 = vmul.f32 %v463, %v433
        %v477 = vmul.f32 %v465, %v433
        %v478 = vmul.f32 %v467, %v433
        %v479 = vmul.f32 %v469, %v433
        %v480 = vmul.f32 %v471, %v433
        %v481 = vmul.f32 %v473, %v433
        %v482 = vadd.f32 %v474, 1e-05
        %v483 = vadd.f32 %v475, 1e-05
        %v484 = vadd.f32 %v476, 1e-05
        %v485 = vadd.f32 %v477, 1e-05
        %v486 = vadd.f32 %v478, 1e-05
        %v487 = vadd.f32 %v479, 1e-05
        %v488 = vadd.f32 %v480, 1e-05
        %v489 = vadd.f32 %v481, 1e-05
        %v490 = vrsqrt.pop %v482
        %v491 = vrsqrt.pop %v483
        %v492 = vrsqrt.pop %v484
        %v493 = vrsqrt.pop %v485
        %v494 = vrsqrt.pop %v486
        %v495 = vrsqrt.pop %v487
        %v496 = vrsqrt.pop %v488
        %v497 = vrsqrt.pop %v489
        %v498 = vmul.f32 %v442, %v490
        %v499 = vmul.f32 %v443, %v491
        %v500 = vmul.f32 %v444, %v492
        %v501 = vmul.f32 %v445, %v493
        %v502 = vmul.f32 %v446, %v494
        %v503 = vmul.f32 %v447, %v495
        %v504 = vmul.f32 %v448, %v496
        %v505 = vmul.f32 %v449, %v497
        %v507 = vlaneseq
        %v508 = vshrl.u32 %v507, 7
        %v509 = vsub.s32 0, %v508
        %v510 = vrot.slane %v398, %v509
        %v512 = vmul.f32 %v498, %v510
        %v513 = vmul.f32 %v499, %v510
        %v514 = vmul.f32 %v500, %v510
        %v515 = vmul.f32 %v501, %v510
        %v516 = vmul.f32 %v502, %v510
        %v517 = vmul.f32 %v503, %v510
        %v518 = vmul.f32 %v504, %v510
        %v519 = vmul.f32 %v505, %v510
        %v521 = vlaneseq
        %v522 = vshrl.u32 %v521, 7
        %v523 = vsub.s32 0, %v522
        %v524 = vrot.slane %v399, %v523
        %v526 = vadd.f32 %v512, %v524
        %v527 = vadd.f32 %v513, %v524
        %v528 = vadd.f32 %v514, %v524
        %v529 = vadd.f32 %v515, %v524
        %v530 = vadd.f32 %v516, %v524
        %v531 = vadd.f32 %v517, %v524
        %v532 = vadd.f32 %v518, %v524
        %v533 = vadd.f32 %v519, %v524
        %v535 = vlaneseq
        %v536 = vshrl.u32 %v535, 7
        %v537 = vsub.s32 0, %v536
        %v538 = vrot.slane %v416, %v537
        %540 = vmatprep.subr.mxu0 0.0
        %541 = vmatpush1.msra.mxu0 %v400
        %542 = vmatprep.subr.mxu0 0.0
        %543 = vmatpush1.msra.mxu0 %v401
        %544 = vmatprep.subr.mxu0 0.0
        %545 = vmatpush1.msra.mxu0 %v402
        %546 = vmatprep.subr.mxu0 0.0
        %547 = vmatpush1.msra.mxu0 %v403
        %548 = vmatprep.subr.mxu0 0.0
        %549 = vmatpush1.msra.mxu0 %v404
        %550 = vmatprep.subr.mxu0 0.0
        %551 = vmatpush1.msra.mxu0 %v405
        %552 = vmatprep.subr.mxu0 0.0
        %553 = vmatpush1.msra.mxu0 %v406
        %554 = vmatprep.subr.mxu0 0.0
        %555 = vmatpush1.msra.mxu0 %v407
        %556 = vmatprep.subr.mxu0 0.0
        %557 = vmatpush1.msra.mxu0 %v408
        %558 = vmatprep.subr.mxu0 0.0
        %559 = vmatpush1.msra.mxu0 %v409
        %560 = vmatprep.subr.mxu0 0.0
        %561 = vmatpush1.msra.mxu0 %v410
        %562 = vmatprep.subr.mxu0 0.0
        %563 = vmatpush1.msra.mxu0 %v411
        %564 = vmatprep.subr.mxu0 0.0
        %565 = vmatpush1.msra.mxu0 %v412
        %566 = vmatprep.subr.mxu0 0.0
        %567 = vmatpush1.msra.mxu0 %v413
        %568 = vmatprep.subr.mxu0 0.0
        %569 = vmatpush1.msra.mxu0 %v414
        %570 = vmatprep.subr.mxu0 0.0
        %571 = vmatpush1.msra.mxu0 %v415
        %572 = vmatprep.subr.mxu0 0.0
        %573 = vmatpush1.msra.mxu0 0.0
        %574 = vmatprep.subr.mxu0 0.0
        %575 = vmatpush1.msra.mxu0 0.0
        %576 = vmatprep.subr.mxu0 0.0
        %577 = vmatpush1.msra.mxu0 0.0
        %578 = vmatprep.subr.mxu0 0.0
        %579 = vmatpush1.msra.mxu0 0.0
        %580 = vmatprep.subr.mxu0 0.0
        %581 = vmatpush1.msra.mxu0 0.0
        %582 = vmatprep.subr.mxu0 0.0
        %583 = vmatpush1.msra.mxu0 0.0
        %584 = vmatprep.subr.mxu0 0.0
        %585 = vmatpush1.msra.mxu0 0.0
        %586 = vmatprep.subr.mxu0 0.0
        %587 = vmatpush1.msra.mxu0 0.0
        %588 = vmatprep.subr.mxu0 0.0
        %589 = vmatpush1.msra.mxu0 0.0
        %590 = vmatprep.subr.mxu0 0.0
        %591 = vmatpush1.msra.mxu0 0.0
        %592 = vmatprep.subr.mxu0 0.0
        %593 = vmatpush1.msra.mxu0 0.0
        %594 = vmatprep.subr.mxu0 0.0
        %595 = vmatpush1.msra.mxu0 0.0
        %596 = vmatprep.subr.mxu0 0.0
        %597 = vmatpush1.msra.mxu0 0.0
        %598 = vmatprep.subr.mxu0 0.0
        %599 = vmatpush1.msra.mxu0 0.0
        %600 = vmatprep.subr.mxu0 0.0
        %601 = vmatpush1.msra.mxu0 0.0
        %602 = vmatprep.subr.mxu0 0.0
        %603 = vmatpush1.msra.mxu0 0.0
        %604 = vmatprep.mubr.f32.mxu0 0.0
        %605 = vmatmul.mubr.f32.gmra.mrb[0].mxu0 %v526
        %v606 = vpop.f32.mrb[0].mxu0
        %v607 = vadd.f32 %v538, %v606
        %v608 = vpop.f32.mrb[0].mxu0
        %609 = vmatprep.mubr.f32.mxu0 0.0
        %610 = vmatmul.mubr.f32.gmra.mrb[0].mxu0 %v527
        %v611 = vpop.f32.mrb[0].mxu0
        %v612 = vadd.f32 %v538, %v611
        %v613 = vpop.f32.mrb[0].mxu0
        %614 = vmatprep.mubr.f32.mxu0 0.0
        %615 = vmatmul.mubr.f32.gmra.mrb[0].mxu0 %v528
        %v616 = vpop.f32.mrb[0].mxu0
        %v617 = vadd.f32 %v538, %v616
        %v618 = vpop.f32.mrb[0].mxu0
        %619 = vmatprep.mubr.f32.mxu0 0.0
        %620 = vmatmul.mubr.f32.gmra.mrb[0].mxu0 %v529
        %v621 = vpop.f32.mrb[0].mxu0
        %v622 = vadd.f32 %v538, %v621
        %v623 = vpop.f32.mrb[0].mxu0
        %624 = vmatprep.mubr.f32.mxu0 0.0
        %625 = vmatmul.mubr.f32.gmra.mrb[0].mxu0 %v530
        %v626 = vpop.f32.mrb[0].mxu0
        %v627 = vadd.f32 %v538, %v626
        %v628 = vpop.f32.mrb[0].mxu0
        %629 = vmatprep.mubr.f32.mxu0 0.0
        %630 = vmatmul.mubr.f32.gmra.mrb[0].mxu0 %v531
        %v631 = vpop.f32.mrb[0].mxu0
        %v632 = vadd.f32 %v538, %v631
        %v633 = vpop.f32.mrb[0].mxu0
        %634 = vmatprep.mubr.f32.mxu0 0.0
        %635 = vmatmul.mubr.f32.gmra.mrb[0].mxu0 %v532
        %v636 = vpop.f32.mrb[0].mxu0
        %v637 = vadd.f32 %v538, %v636
        %v638 = vpop.f32.mrb[0].mxu0
        %639 = vmatprep.mubr.f32.mxu0 0.0
        %640 = vmatmul.mubr.f32.gmra.mrb[0].mxu0 %v533
        %v641 = vpop.f32.mrb[0].mxu0
        %v642 = vadd.f32 %v538, %v641
        %v643 = vpop.f32.mrb[0].mxu0
        %644 = vdwg.mxu0
        %645 = vst [vmem:[%s354] sm:$0xff] %v607
        %646 = vst [vmem:[%s354 + $0x8] sm:$0xff] %v612
        %647 = vst [vmem:[%s354 + $0x10] sm:$0xff] %v617
        %648 = vst [vmem:[%s354 + $0x18] sm:$0xff] %v622
        %649 = vst [vmem:[%s354 + $0x20] sm:$0xff] %v627
        %650 = vst [vmem:[%s354 + $0x28] sm:$0xff] %v632
        %651 = vst [vmem:[%s354 + $0x30] sm:$0xff] %v637
        %652 = vst [vmem:[%s354 + $0x38] sm:$0xff] %v642
        %s653 = sand.u32 %s175, 1
        %s654 = scalar_lea.sflag [#allocation4], %s653
        %s655 = sand.u32 %s175, 1
        %s656 = smul.addr %s655, 64
        %s657 = scalar_lea.vmem [#allocation8], %s656
        %s658 = sand.u32 %s201, 1
        %s659 = scalar_lea.sflag [#allocation10], %s658
        %s660 = sand.u32 %s201, 1
        %s661 = smul.addr %s660, 64
        %s662 = scalar_lea.vmem [#allocation9], %s661
        // Predicated region
        $region57: #{tpu_custom_call.1} parent=43 // pred_check
          %p663 = pneg %p185
        $region58: #{tpu_custom_call.1} parent=43 // pred_check_branch
          %665 = sbr.rel (%p663) target = $region60
        $region59: #{tpu_custom_call.1} parent=43 // pred_region
          %s666 = smul.u32 8, %s31
          %s668 = ssub.s32 1024, 1024
          %669 = vsyncadd %s654, %s668
          %s670 = smul.addr %s666, 128
          %s671 = scalar_lea.hbm %s6, %s670
          %s672 = sshll.u32 %s657, 4
          %s673 = int_to_ptr.vmem [resolvable:$true] %s672
          %678 = dma.vmem_to_hbm [thread:$0]  %s673, 1024, %s671, %s654, 128, 128, 8
        $region60: #{tpu_custom_call.1} parent=43 // pred_fallthru
          _
        // Predicated region
        $region61: #{tpu_custom_call.1} parent=43 // pred_check
          %p679 = pneg %p211
        $region62: #{tpu_custom_call.1} parent=43 // pred_check_branch
          %681 = sbr.rel (%p679) target = $region64
        $region63: #{tpu_custom_call.1} parent=43 // pred_region
          %s682 = smul.u32 8, %s31
          %s684 = ssub.s32 1024, 1024
          %685 = vsyncadd %s659, %s684
          %s686 = smul.addr %s682, 128
          %s687 = scalar_lea.hbm %s7, %s686
          %s688 = sshll.u32 %s662, 4
          %s689 = int_to_ptr.vmem [resolvable:$true] %s688
          %694 = dma.vmem_to_hbm [thread:$0]  %s689, 1024, %s687, %s659, 128, 128, 8
        $region64: #{tpu_custom_call.1} parent=43 // pred_fallthru
          _
      $region44: #{tpu_custom_call.1} parent=5 // pred_fallthru
        _
      %p695 = scmp.le.s32.totalorder 2, %s26
      // Predicated region
      $region65: #{tpu_custom_call.1} parent=5 // pred_check
        %p696 = pneg %p695
      $region66: #{tpu_custom_call.1} parent=5 // pred_check_branch
        %698 = sbr.rel (%p696) target = $region68
      $region67: #{tpu_custom_call.1} parent=5 // pred_region
        %s699 = ssub.s32 %s26, 2
        // Predicated region
        $region69: #{tpu_custom_call.1} parent=67 // pred_check
          %p700 = pneg %p191
        $region70: #{tpu_custom_call.1} parent=67 // pred_check_branch
          %702 = sbr.rel (%p700) target = $region72
        $region71: #{tpu_custom_call.1} parent=67 // pred_region
          %s703 = sand.u32 %s176, 1
          %s704 = scalar_lea.sflag [#allocation4], %s703
          %s705 = sand.u32 %s176, 1
          %s706 = smul.addr %s705, 64
          %s707 = scalar_lea.vmem [#allocation8], %s706
          %708 = dma.done %s704, 1024
        $region72: #{tpu_custom_call.1} parent=67 // pred_fallthru
          _
        // Predicated region
        $region73: #{tpu_custom_call.1} parent=67 // pred_check
          %p709 = pneg %p217
        $region74: #{tpu_custom_call.1} parent=67 // pred_check_branch
          %711 = sbr.rel (%p709) target = $region76
        $region75: #{tpu_custom_call.1} parent=67 // pred_region
          %s712 = sand.u32 %s202, 1
          %s713 = scalar_lea.sflag [#allocation10], %s712
          %s714 = sand.u32 %s202, 1
          %s715 = smul.addr %s714, 64
          %s716 = scalar_lea.vmem [#allocation9], %s715
          %717 = dma.done %s713, 1024
        $region76: #{tpu_custom_call.1} parent=67 // pred_fallthru
          _
      $region68: #{tpu_custom_call.1} parent=5 // pred_fallthru
        _
    $region6: #{tpu_custom_call.1} parent=1 // loop_footer
      %s30 = sadd.s32 1, %s26
    $region7: #{tpu_custom_call.1} parent=1 // loop_footer_branch
      %25 = sbr.rel target = $region3
    $region8: #{tpu_custom_call.1} parent=1 // loop_exit
      _
    %718 = vsyncpa [#allocation3], 1
    %s719 = scalar_lea.sflag [#allocation3], 1
    %720 = vsyncpa %s719, 1
    %721 = vsyncpa [#allocation6], 1
    %s722 = scalar_lea.sflag [#allocation6], 1
    %723 = vsyncpa %s722, 1
    %724 = vsyncpa [#allocation4], 1
    %s725 = scalar_lea.sflag [#allocation4], 1
    %726 = vsyncpa %s725, 1
    %727 = vsyncpa [#allocation10], 1
    %s728 = scalar_lea.sflag [#allocation10], 1
    %729 = vsyncpa %s728, 1

// kernel: tpu_custom_call.1
$region0: #{tpu_custom_call.1}
  #allocation0 [shape = 'u32[]', space=smem, size = 0x4, offset = 0x4, fixed_abs, tag = 'smem constant byte address 0x4 - core index']
  #allocation1 [shape = 'u32[144,128]{1,0:T(1,128)}', space=vmem, size = 0x12000, scoped, tag = 'internal scratch']
  %s0 = inlined_call_operand.hbm [shape: f32[128,128], index: 0, kind: input, shape index: {}]
  %s1 = inlined_call_operand.hbm [shape: f32[128,128], index: 1, kind: input, shape index: {}]
  %s2 = inlined_call_operand.vmem [shape: f32[1,128], index: 2, kind: input, shape index: {}]
  %s3 = inlined_call_operand.vmem [shape: f32[1,128], index: 3, kind: input, shape index: {}]
  %s4 = inlined_call_operand.hbm [shape: f32[128,128], index: 4, kind: input, shape index: {}]
  %s5 = inlined_call_operand.vmem [shape: f32[1,128], index: 5, kind: input, shape index: {}]
  %s6 = inlined_call_operand.hbm [shape: f32[128,128], index: 6, kind: output, shape index: {0}]
  %s7 = inlined_call_operand.hbm [shape: f32[128,128], index: 7, kind: output, shape index: {1}]
  %8 = xla_tuple %s6, %s7
  %s9 = sld [smem:[#allocation0]]
  $region77: #{tpu_custom_call.1} parent=0
    _
  %s11 = ssub.s32 1, %s9
  %s12 = scalar_select 0, %s11, %s9
  $region1: #{tpu_custom_call.1} parent=0
    #allocation2 [shape = 'u8[65536]{0}', space=vmem, size = 0x10000, scoped, tag = 'input window, operand 0']
    #allocation3 [shape = 's32[2]{0}', space=sflag, size = 0x8, scoped, tag = 'scoped memory for tpu_custom_call.1']
    #allocation4 [shape = 's32[2]{0}', space=sflag, size = 0x8, scoped, tag = 'scoped memory for tpu_custom_call.1']
    #allocation5 [shape = 'u8[65536]{0}', space=vmem, size = 0x10000, scoped, tag = 'input window, operand 1']
    #allocation6 [shape = 's32[2]{0}', space=sflag, size = 0x8, scoped, tag = 'scoped memory for tpu_custom_call.1']
    #allocation7 [shape = 'u8[65536]{0}', space=vmem, size = 0x10000, scoped, tag = 'input window, operand 4, single buffered']
    #allocation8 [shape = 'u8[65536]{0}', space=vmem, size = 0x10000, scoped, tag = 'output window, operand 0']
    #allocation9 [shape = 'u8[65536]{0}', space=vmem, size = 0x10000, scoped, tag = 'output window, operand 1']
    #allocation10 [shape = 's32[2]{0}', space=sflag, size = 0x8, scoped, tag = 'scoped memory for tpu_custom_call.1']
    %13 = vsyncpa [#allocation3], 0
    %s14 = scalar_lea.sflag [#allocation3], 1
    %15 = vsyncpa %s14, 0
    %16 = vsyncpa [#allocation6], 0
    %s17 = scalar_lea.sflag [#allocation6], 1
    %18 = vsyncpa %s17, 0
    %19 = vsyncpa [#allocation4], 0
    %s20 = scalar_lea.sflag [#allocation4], 1
    %21 = vsyncpa %s20, 0
    %22 = vsyncpa [#allocation10], 0
    %s23 = scalar_lea.sflag [#allocation10], 1
    %24 = vsyncpa %s23, 0
    loop: start=0, step=1, limit=4
    $region2: #{tpu_custom_call.1} parent=1 // loop_pre_header
      _
    $region3: #{tpu_custom_call.1} parent=1 // loop_header
      %s26 = sphi 0, %s30
      %p27 = scmp.ge.s32.totalorder %s26, 4
      %s36 = sphi 0, %s38
      %s39 = sphi 0, %s36
      %s40 = sphi 0, %s39
      %s56 = sphi 0, %s40
      %s62 = sphi 0, %s64
      %s65 = sphi 0, %s62
      %s66 = sphi 0, %s65
      %s82 = sphi 0, %s66
      %s86 = sphi 0, %s86
      %s88 = sphi 0, %s86
      %s89 = sphi 0, %s88
      %s103 = sphi 0, %s89
      %s107 = sphi 0, %s107
      %s109 = sphi 0, %s107
      %s110 = sphi 0, %s109
      %s124 = sphi 0, %s110
      %s128 = sphi 0, %s128
      %s130 = sphi 0, %s128
      %s131 = sphi 0, %s130
      %s145 = sphi 0, %s131
      %s149 = sphi 0, %s149
      %s151 = sphi 0, %s149
      %s152 = sphi 0, %s151
      %s166 = sphi 0, %s152
      %s172 = sphi 0, %s174
      %s175 = sphi 0, %s172
      %s176 = sphi 0, %s175
      %s192 = sphi 0, %s176
      %s198 = sphi 0, %s200
      %s201 = sphi 0, %s198
      %s202 = sphi 0, %s201
      %s218 = sphi 0, %s202
    $region4: #{tpu_custom_call.1} parent=1 // loop_header_branch
      %29 = sbr.rel (%p27) target = $region8
    $region5: #{tpu_custom_call.1} parent=1 // loop_body
      %s31 = ssub.s32 %s26, 1
      %s32 = ssub.s32 %s26, 2
      %s33 = sadd.s32 %s26, 1
      %s34 = ssub.s32 %s26, %s33
      %p35 = scmp.eq.s32.totalorder %s34, 0
      %s37 = sadd.s32 %s36, 1
      %s38 = scalar_select %p35, %s36, %s37
      %p41 = pneg %p35
      %p42 = scmp.eq.s32.totalorder %s26, 1
      %p43 = por %p41, %p42
      %p44 = scmp.ne.s32.totalorder %s36, %s39
      %p45 = scmp.eq.s32.totalorder %s26, 0
      %p46 = por %p44, %p45
      %p47 = scmp.ne.s32.totalorder %s36, %s39
      %p48 = scmp.eq.s32.totalorder %s31, 1
      %p49 = por %p47, %p48
      %p50 = scmp.ne.s32.totalorder %s39, %s40
      %p51 = scmp.eq.s32.totalorder %s31, 0
      %p52 = por %p50, %p51
      %p53 = scmp.ne.s32.totalorder %s39, %s40
      %p54 = scmp.eq.s32.totalorder %s32, 1
      %p55 = por %p53, %p54
      %p57 = scmp.ne.s32.totalorder %s40, %s56
      %p58 = scmp.eq.s32.totalorder %s32, 0
      %p59 = por %p57, %p58
      %s60 = ssub.s32 %s26, %s33
      %p61 = scmp.eq.s32.totalorder %s60, 0
      %s63 = sadd.s32 %s62, 1
      %s64 = scalar_select %p61, %s62, %s63
      %p67 = pneg %p61
      %p68 = scmp.eq.s32.totalorder %s26, 1
      %p69 = por %p67, %p68
      %p70 = scmp.ne.s32.totalorder %s62, %s65
      %p71 = scmp.eq.s32.totalorder %s26, 0
      %p72 = por %p70, %p71
      %p73 = scmp.ne.s32.totalorder %s62, %s65
      %p74 = scmp.eq.s32.totalorder %s31, 1
      %p75 = por %p73, %p74
      %p76 = scmp.ne.s32.totalorder %s65, %s66
      %p77 = scmp.eq.s32.totalorder %s31, 0
      %p78 = por %p76, %p77
      %p79 = scmp.ne.s32.totalorder %s65, %s66
      %p80 = scmp.eq.s32.totalorder %s32, 1
      %p81 = por %p79, %p80
      %p83 = scmp.ne.s32.totalorder %s66, %s82
      %p84 = scmp.eq.s32.totalorder %s32, 0
      %p85 = por %p83, %p84
      %s87 = sadd.s32 %s86, 1
      %p90 = scmp.eq.s32.totalorder %s26, 1
      %p91 = scmp.ne.s32.totalorder %s86, %s88
      %p92 = scmp.eq.s32.totalorder %s26, 0
      %p93 = por %p91, %p92
      %p94 = scmp.ne.s32.totalorder %s86, %s88
      %p95 = scmp.eq.s32.totalorder %s31, 1
      %p96 = por %p94, %p95
      %p97 = scmp.ne.s32.totalorder %s88, %s89
      %p98 = scmp.eq.s32.totalorder %s31, 0
      %p99 = por %p97, %p98
      %p100 = scmp.ne.s32.totalorder %s88, %s89
      %p101 = scmp.eq.s32.totalorder %s32, 1
      %p102 = por %p100, %p101
      %p104 = scmp.ne.s32.totalorder %s89, %s103
      %p105 = scmp.eq.s32.totalorder %s32, 0
      %p106 = por %p104, %p105
      %s108 = sadd.s32 %s107, 1
      %p111 = scmp.eq.s32.totalorder %s26, 1
      %p112 = scmp.ne.s32.totalorder %s107, %s109
      %p113 = scmp.eq.s32.totalorder %s26, 0
      %p114 = por %p112, %p113
      %p115 = scmp.ne.s32.totalorder %s107, %s109
      %p116 = scmp.eq.s32.totalorder %s31, 1
      %p117 = por %p115, %p116
      %p118 = scmp.ne.s32.totalorder %s109, %s110
      %p119 = scmp.eq.s32.totalorder %s31, 0
      %p120 = por %p118, %p119
      %p121 = scmp.ne.s32.totalorder %s109, %s110
      %p122 = scmp.eq.s32.totalorder %s32, 1
      %p123 = por %p121, %p122
      %p125 = scmp.ne.s32.totalorder %s110, %s124
      %p126 = scmp.eq.s32.totalorder %s32, 0
      %p127 = por %p125, %p126
      %s129 = sadd.s32 %s128, 1
      %p132 = scmp.eq.s32.totalorder %s26, 1
      %p133 = scmp.ne.s32.totalorder %s128, %s130
      %p134 = scmp.eq.s32.totalorder %s26, 0
      %p135 = por %p133, %p134
      %p136 = scmp.ne.s32.totalorder %s128, %s130
      %p137 = scmp.eq.s32.totalorder %s31, 1
      %p138 = por %p136, %p137
      %p139 = scmp.ne.s32.totalorder %s130, %s131
      %p140 = scmp.eq.s32.totalorder %s31, 0
      %p141 = por %p139, %p140
      %p142 = scmp.ne.s32.totalorder %s130, %s131
      %p143 = scmp.eq.s32.totalorder %s32, 1
      %p144 = por %p142, %p143
      %p146 = scmp.ne.s32.totalorder %s131, %s145
      %p147 = scmp.eq.s32.totalorder %s32, 0
      %p148 = por %p146, %p147
      %s150 = sadd.s32 %s149, 1
      %p153 = scmp.eq.s32.totalorder %s26, 1
      %p154 = scmp.ne.s32.totalorder %s149, %s151
      %p155 = scmp.eq.s32.totalorder %s26, 0
      %p156 = por %p154, %p155
      %p157 = scmp.ne.s32.totalorder %s149, %s151
      %p158 = scmp.eq.s32.totalorder %s31, 1
      %p159 = por %p157, %p158
      %p160 = scmp.ne.s32.totalorder %s151, %s152
      %p161 = scmp.eq.s32.totalorder %s31, 0
      %p162 = por %p160, %p161
      %p163 = scmp.ne.s32.totalorder %s151, %s152
      %p164 = scmp.eq.s32.totalorder %s32, 1
      %p165 = por %p163, %p164
      %p167 = scmp.ne.s32.totalorder %s152, %s166
      %p168 = scmp.eq.s32.totalorder %s32, 0
      %p169 = por %p167, %p168
      %s170 = ssub.s32 %s26, %s33
      %p171 = scmp.eq.s32.totalorder %s170, 0
      %s173 = sadd.s32 %s172, 1
      %s174 = scalar_select %p171, %s172, %s173
      %p177 = pneg %p171
      %p178 = scmp.eq.s32.totalorder %s26, 1
      %p179 = por %p177, %p178
      %p180 = scmp.ne.s32.totalorder %s172, %s175
      %p181 = scmp.eq.s32.totalorder %s26, 0
      %p182 = por %p180, %p181
      %p183 = scmp.ne.s32.totalorder %s172, %s175
      %p184 = scmp.eq.s32.totalorder %s31, 1
      %p185 = por %p183, %p184
      %p186 = scmp.ne.s32.totalorder %s175, %s176
      %p187 = scmp.eq.s32.totalorder %s31, 0
      %p188 = por %p186, %p187
      %p189 = scmp.ne.s32.totalorder %s175, %s176
      %p190 = scmp.eq.s32.totalorder %s32, 1
      %p191 = por %p189, %p190
      %p193 = scmp.ne.s32.totalorder %s176, %s192
      %p194 = scmp.eq.s32.totalorder %s32, 0
      %p195 = por %p193, %p194
      %s196 = ssub.s32 %s26, %s33
      %p197 = scmp.eq.s32.totalorder %s196, 0
      %s199 = sadd.s32 %s198, 1
      %s200 = scalar_select %p197, %s198, %s199
      %p203 = pneg %p197
      %p204 = scmp.eq.s32.totalorder %s26, 1
      %p205 = por %p203, %p204
      %p206 = scmp.ne.s32.totalorder %s198, %s201
      %p207 = scmp.eq.s32.totalorder %s26, 0
      %p208 = por %p206, %p207
      %p209 = scmp.ne.s32.totalorder %s198, %s201
      %p210 = scmp.eq.s32.totalorder %s31, 1
      %p211 = por %p209, %p210
      %p212 = scmp.ne.s32.totalorder %s201, %s202
      %p213 = scmp.eq.s32.totalorder %s31, 0
      %p214 = por %p212, %p213
      %p215 = scmp.ne.s32.totalorder %s201, %s202
      %p216 = scmp.eq.s32.totalorder %s32, 1
      %p217 = por %p215, %p216
      %p219 = scmp.ne.s32.totalorder %s202, %s218
      %p220 = scmp.eq.s32.totalorder %s32, 0
      %p221 = por %p219, %p220
      %p222 = scmp.le.s32.totalorder 1, %s26
      %p223 = scmp.lt.s32.totalorder %s26, 3
      %p224 = pnand %p222, %p223
      %p225 = pneg %p224
      // Predicated region
      $region9: #{tpu_custom_call.1} parent=5 // pred_check
        _
      $region10: #{tpu_custom_call.1} parent=5 // pred_check_branch
        %227 = sbr.rel (%p224) target = $region12
      $region11: #{tpu_custom_call.1} parent=5 // pred_region
        %s228 = ssub.s32 %s26, 1
        // Predicated region
        $region13: #{tpu_custom_call.1} parent=11 // pred_check
          %p229 = pneg %p99
        $region14: #{tpu_custom_call.1} parent=11 // pred_check_branch
          %231 = sbr.rel (%p229) target = $region16
        $region15: #{tpu_custom_call.1} parent=11 // pred_region
          _
        $region16: #{tpu_custom_call.1} parent=11 // pred_fallthru
          _
        // Predicated region
        $region17: #{tpu_custom_call.1} parent=11 // pred_check
          %p232 = pneg %p120
        $region18: #{tpu_custom_call.1} parent=11 // pred_check_branch
          %234 = sbr.rel (%p232) target = $region20
        $region19: #{tpu_custom_call.1} parent=11 // pred_region
          _
        $region20: #{tpu_custom_call.1} parent=11 // pred_fallthru
          _
        // Predicated region
        $region21: #{tpu_custom_call.1} parent=11 // pred_check
          %p235 = pneg %p141
        $region22: #{tpu_custom_call.1} parent=11 // pred_check_branch
          %237 = sbr.rel (%p235) target = $region24
        $region23: #{tpu_custom_call.1} parent=11 // pred_region
          %s239 = ssub.s32 2048, 2048
          %240 = vsyncadd [#allocation6], %s239
          %s241 = sshll.u32 [#allocation7], 4
          %s242 = int_to_ptr.vmem [resolvable:$true] %s241
          %247 = dma.hbm_to_vmem [thread:$0]  %s4, 2048, %s242, [#allocation6], 128, 128, 8
        $region24: #{tpu_custom_call.1} parent=11 // pred_fallthru
          _
        // Predicated region
        $region25: #{tpu_custom_call.1} parent=11 // pred_check
          %p248 = pneg %p162
        $region26: #{tpu_custom_call.1} parent=11 // pred_check_branch
          %250 = sbr.rel (%p248) target = $region28
        $region27: #{tpu_custom_call.1} parent=11 // pred_region
          _
        $region28: #{tpu_custom_call.1} parent=11 // pred_fallthru
          _
      $region12: #{tpu_custom_call.1} parent=5 // pred_fallthru
        _
      %p251 = scmp.lt.s32.totalorder %s26, 2
      // Predicated region
      $region29: #{tpu_custom_call.1} parent=5 // pred_check
        %p252 = pneg %p251
      $region30: #{tpu_custom_call.1} parent=5 // pred_check_branch
        %254 = sbr.rel (%p252) target = $region32
      $region31: #{tpu_custom_call.1} parent=5 // pred_region
        // Predicated region
        $region33: #{tpu_custom_call.1} parent=31 // pred_check
          %p255 = pneg %p46
        $region34: #{tpu_custom_call.1} parent=31 // pred_check_branch
          %257 = sbr.rel (%p255) target = $region36
        $region35: #{tpu_custom_call.1} parent=31 // pred_region
          %s258 = sand.u32 %s36, 1
          %s259 = scalar_lea.sflag [#allocation3], %s258
          %s260 = sand.u32 %s36, 1
          %s261 = smul.addr %s260, 64
          %s262 = scalar_lea.vmem [#allocation2], %s261
          %s263 = smul.u32 8, %s26
          %s265 = ssub.s32 1024, 1024
          %266 = vsyncadd %s259, %s265
          %s267 = smul.addr %s263, 128
          %s268 = scalar_lea.hbm %s0, %s267
          %s269 = sshll.u32 %s262, 4
          %s270 = int_to_ptr.vmem [resolvable:$true] %s269
          %275 = dma.hbm_to_vmem [thread:$0]  %s268, 1024, %s270, %s259, 128, 128, 8
        $region36: #{tpu_custom_call.1} parent=31 // pred_fallthru
          _
        // Predicated region
        $region37: #{tpu_custom_call.1} parent=31 // pred_check
          %p276 = pneg %p72
        $region38: #{tpu_custom_call.1} parent=31 // pred_check_branch
          %278 = sbr.rel (%p276) target = $region40
        $region39: #{tpu_custom_call.1} parent=31 // pred_region
          %s279 = sand.u32 %s26, 1
          %s280 = scalar_lea.sflag [#allocation6], %s279
          %s281 = sand.u32 %s62, 1
          %s282 = smul.addr %s281, 64
          %s283 = scalar_lea.vmem [#allocation5], %s282
          %s284 = smul.u32 8, %s26
          %s286 = ssub.s32 1024, 1024
          %287 = vsyncadd %s280, %s286
          %s288 = smul.addr %s284, 128
          %s289 = scalar_lea.hbm %s1, %s288
          %s290 = sshll.u32 %s283, 4
          %s291 = int_to_ptr.vmem [resolvable:$true] %s290
          %296 = dma.hbm_to_vmem [thread:$0]  %s289, 1024, %s291, %s280, 128, 128, 8
        $region40: #{tpu_custom_call.1} parent=31 // pred_fallthru
          _
      $region32: #{tpu_custom_call.1} parent=5 // pred_fallthru
        _
      %p297 = scmp.le.s32.totalorder 1, %s26
      %p298 = scmp.lt.s32.totalorder %s26, 3
      %p299 = pnand %p297, %p298
      %p300 = pneg %p299
      // Predicated region
      $region41: #{tpu_custom_call.1} parent=5 // pred_check
        _
      $region42: #{tpu_custom_call.1} parent=5 // pred_check_branch
        %302 = sbr.rel (%p299) target = $region44
      $region43: #{tpu_custom_call.1} parent=5 // pred_region
        %s303 = ssub.s32 %s26, 1
        %s304 = sand.u32 %s39, 1
        %s305 = scalar_lea.sflag [#allocation3], %s304
        %s306 = sand.u32 %s39, 1
        %s307 = smul.addr %s306, 64
        %s308 = scalar_lea.vmem [#allocation2], %s307
        // Predicated region
        $region45: #{tpu_custom_call.1} parent=43 // pred_check
          %p309 = pneg %p52
        $region46: #{tpu_custom_call.1} parent=43 // pred_check_branch
          %311 = sbr.rel (%p309) target = $region48
        $region47: #{tpu_custom_call.1} parent=43 // pred_region
          %312 = dma.done %s305, 1024
        $region48: #{tpu_custom_call.1} parent=43 // pred_fallthru
          _
        %s313 = sand.u32 %s31, 1
        %s314 = scalar_lea.sflag [#allocation6], %s313
        %s315 = sand.u32 %s65, 1
        %s316 = smul.addr %s315, 64
        %s317 = scalar_lea.vmem [#allocation5], %s316
        // Predicated region
        $region49: #{tpu_custom_call.1} parent=43 // pred_check
          %p318 = pneg %p78
        $region50: #{tpu_custom_call.1} parent=43 // pred_check_branch
          %320 = sbr.rel (%p318) target = $region52
        $region51: #{tpu_custom_call.1} parent=43 // pred_region
          %321 = dma.done %s314, 1024
        $region52: #{tpu_custom_call.1} parent=43 // pred_fallthru
          _
        // Predicated region
        $region53: #{tpu_custom_call.1} parent=43 // pred_check
          %p322 = pneg %p141
        $region54: #{tpu_custom_call.1} parent=43 // pred_check_branch
          %324 = sbr.rel (%p322) target = $region56
        $region55: #{tpu_custom_call.1} parent=43 // pred_region
          %325 = dma.done [#allocation6], 2048
        $region56: #{tpu_custom_call.1} parent=43 // pred_fallthru
          _
        %s326 = sand.u32 %s39, 1
        %s327 = scalar_lea.sflag [#allocation3], %s326
        %s328 = sand.u32 %s39, 1
        %s329 = smul.addr %s328, 64
        %s330 = scalar_lea.vmem [#allocation2], %s329
        %p331 = pneg %p52
        %p332 = pneg %p49
        %s333 = sand.u32 %s31, 1
        %s334 = scalar_lea.sflag [#allocation6], %s333
        %s335 = sand.u32 %s65, 1
        %s336 = smul.addr %s335, 64
        %s337 = scalar_lea.vmem [#allocation5], %s336
        %p338 = pneg %p78
        %p339 = pneg %p75
        %p340 = pneg %p99
        %p341 = pneg %p96
        %p342 = pneg %p120
        %p343 = pneg %p117
        %p344 = pneg %p141
        %p345 = pneg %p138
        %p346 = pneg %p162
        %p347 = pneg %p159
        %p348 = pneg %p188
        %p349 = pneg %p185
        %s350 = sand.u32 %s175, 1
        %s351 = scalar_lea.sflag [#allocation4], %s350
        %s352 = sand.u32 %s175, 1
        %s353 = smul.addr %s352, 64
        %s354 = scalar_lea.vmem [#allocation8], %s353
        %p355 = pneg %p214
        %p356 = pneg %p211
        %s357 = sand.u32 %s201, 1
        %s358 = scalar_lea.sflag [#allocation10], %s357
        %s359 = sand.u32 %s201, 1
        %s360 = smul.addr %s359, 64
        %s361 = scalar_lea.vmem [#allocation9], %s360
        %s362 = smul.u32 8, %s31
        %s363 = smul.u32 8, %s31
        %s364 = smul.u32 8, %s31
        %s365 = smul.u32 8, %s31
        %v366 = vld [vmem:[%s308] sm:$0xff]
        %v367 = vld [vmem:[%s308 + $0x8] sm:$0xff]
        %v368 = vld [vmem:[%s308 + $0x10] sm:$0xff]
        %v369 = vld [vmem:[%s308 + $0x18] sm:$0xff]
        %v370 = vld [vmem:[%s308 + $0x20] sm:$0xff]
        %v371 = vld [vmem:[%s308 + $0x28] sm:$0xff]
        %v372 = vld [vmem:[%s308 + $0x30] sm:$0xff]
        %v373 = vld [vmem:[%s308 + $0x38] sm:$0xff]
        %v374 = vld [vmem:[%s317] sm:$0xff]
        %v375 = vld [vmem:[%s317 + $0x8] sm:$0xff]
        %v376 = vld [vmem:[%s317 + $0x10] sm:$0xff]
        %v377 = vld [vmem:[%s317 + $0x18] sm:$0xff]
        %v378 = vld [vmem:[%s317 + $0x20] sm:$0xff]
        %v379 = vld [vmem:[%s317 + $0x28] sm:$0xff]
        %v380 = vld [vmem:[%s317 + $0x30] sm:$0xff]
        %v381 = vld [vmem:[%s317 + $0x38] sm:$0xff]
        %v382 = vadd.f32 %v366, %v374
        %v383 = vadd.f32 %v367, %v375
        %v384 = vadd.f32 %v368, %v376
        %v385 = vadd.f32 %v369, %v377
        %v386 = vadd.f32 %v370, %v378
        %v387 = vadd.f32 %v371, %v379
        %v388 = vadd.f32 %v372, %v380
        %v389 = vadd.f32 %v373, %v381
        %390 = vst [vmem:[%s361] sm:$0xff] %v382
        %391 = vst [vmem:[%s361 + $0x8] sm:$0xff] %v383
        %392 = vst [vmem:[%s361 + $0x10] sm:$0xff] %v384
        %393 = vst [vmem:[%s361 + $0x18] sm:$0xff] %v385
        %394 = vst [vmem:[%s361 + $0x20] sm:$0xff] %v386
        %395 = vst [vmem:[%s361 + $0x28] sm:$0xff] %v387
        %396 = vst [vmem:[%s361 + $0x30] sm:$0xff] %v388
        %397 = vst [vmem:[%s361 + $0x38] sm:$0xff] %v389
        %v398 = vld [vmem:[%s2] sm:$0x1]
        %v399 = vld [vmem:[%s3] sm:$0x1]
        %v400 = vld [vmem:[#allocation7] sm:$0xff]
        %v401 = vld [vmem:[#allocation7 + $0x8] sm:$0xff]
        %v402 = vld [vmem:[#allocation7 + $0x10] sm:$0xff]
        %v403 = vld [vmem:[#allocation7 + $0x18] sm:$0xff]
        %v404 = vld [vmem:[#allocation7 + $0x20] sm:$0xff]
        %v405 = vld [vmem:[#allocation7 + $0x28] sm:$0xff]
        %v406 = vld [vmem:[#allocation7 + $0x30] sm:$0xff]
        %v407 = vld [vmem:[#allocation7 + $0x38] sm:$0xff]
        %v408 = vld [vmem:[#allocation7 + $0x40] sm:$0xff]
        %v409 = vld [vmem:[#allocation7 + $0x48] sm:$0xff]
        %v410 = vld [vmem:[#allocation7 + $0x50] sm:$0xff]
        %v411 = vld [vmem:[#allocation7 + $0x58] sm:$0xff]
        %v412 = vld [vmem:[#allocation7 + $0x60] sm:$0xff]
        %v413 = vld [vmem:[#allocation7 + $0x68] sm:$0xff]
        %v414 = vld [vmem:[#allocation7 + $0x70] sm:$0xff]
        %v415 = vld [vmem:[#allocation7 + $0x78] sm:$0xff]
        %v416 = vld [vmem:[%s5] sm:$0x1]
        %417 = vadd.xlane.f32.xlu0 %v382
        %v418 = vpop.xlane.xlu0 %417
        %419 = vadd.xlane.f32.xlu0 %v383
        %v420 = vpop.xlane.xlu0 %419
        %421 = vadd.xlane.f32.xlu0 %v384
        %v422 = vpop.xlane.xlu0 %421
        %423 = vadd.xlane.f32.xlu0 %v385
        %v424 = vpop.xlane.xlu0 %423
        %425 = vadd.xlane.f32.xlu0 %v386
        %v426 = vpop.xlane.xlu0 %425
        %427 = vadd.xlane.f32.xlu0 %v387
        %v428 = vpop.xlane.xlu0 %427
        %429 = vadd.xlane.f32.xlu0 %v388
        %v430 = vpop.xlane.xlu0 %429
        %431 = vadd.xlane.f32.xlu0 %v389
        %v432 = vpop.xlane.xlu0 %431
        %v433 = vrcp.pop 128.0
        %v434 = vmul.f32 %v418, %v433
        %v435 = vmul.f32 %v420, %v433
        %v436 = vmul.f32 %v422, %v433
        %v437 = vmul.f32 %v424, %v433
        %v438 = vmul.f32 %v426, %v433
        %v439 = vmul.f32 %v428, %v433
        %v440 = vmul.f32 %v430, %v433
        %v441 = vmul.f32 %v432, %v433
        %v442 = vsub.f32 %v382, %v434
        %v443 = vsub.f32 %v383, %v435
        %v444 = vsub.f32 %v384, %v436
        %v445 = vsub.f32 %v385, %v437
        %v446 = vsub.f32 %v386, %v438
        %v447 = vsub.f32 %v387, %v439
        %v448 = vsub.f32 %v388, %v440
        %v449 = vsub.f32 %v389, %v441
        %v450 = vmul.f32 %v442, %v442
        %v451 = vmul.f32 %v443, %v443
        %v452 = vmul.f32 %v444, %v444
        %v453 = vmul.f32 %v445, %v445
        %v454 = vmul.f32 %v446, %v446
        %v455 = vmul.f32 %v447, %v447
        %v456 = vmul.f32 %v448, %v448
        %v457 = vmul.f32 %v449, %v449
        %458 = vadd.xlane.f32.xlu0 %v450
        %v459 = vpop.xlane.xlu0 %458
        %460 = vadd.xlane.f32.xlu0 %v451
        %v461 = vpop.xlane.xlu0 %460
        %462 = vadd.xlane.f32.xlu0 %v452
        %v463 = vpop.xlane.xlu0 %462
        %464 = vadd.xlane.f32.xlu0 %v453
        %v465 = vpop.xlane.xlu0 %464
        %466 = vadd.xlane.f32.xlu0 %v454
        %v467 = vpop.xlane.xlu0 %466
        %468 = vadd.xlane.f32.xlu0 %v455
        %v469 = vpop.xlane.xlu0 %468
        %470 = vadd.xlane.f32.xlu0 %v456
        %v471 = vpop.xlane.xlu0 %470
        %472 = vadd.xlane.f32.xlu0 %v457
        %v473 = vpop.xlane.xlu0 %472
        %v474 = vmul.f32 %v459, %v433
        %v475 = vmul.f32 %v461, %v433
        %v476 = vmul.f32 %v463, %v433
        %v477 = vmul.f32 %v465, %v433
        %v478 = vmul.f32 %v467, %v433
        %v479 = vmul.f32 %v469, %v433
        %v480 = vmul.f32 %v471, %v433
        %v481 = vmul.f32 %v473, %v433
        %v482 = vadd.f32 %v474, 1e-05
        %v483 = vadd.f32 %v475, 1e-05
        %v484 = vadd.f32 %v476, 1e-05
        %v485 = vadd.f32 %v477, 1e-05
        %v486 = vadd.f32 %v478, 1e-05
        %v487 = vadd.f32 %v479, 1e-05
        %v488 = vadd.f32 %v480, 1e-05
        %v489 = vadd.f32 %v481, 1e-05
        %v490 = vrsqrt.pop %v482
        %v491 = vrsqrt.pop %v483
        %v492 = vrsqrt.pop %v484
        %v493 = vrsqrt.pop %v485
        %v494 = vrsqrt.pop %v486
        %v495 = vrsqrt.pop %v487
        %v496 = vrsqrt.pop %v488
        %v497 = vrsqrt.pop %v489
        %v498 = vmul.f32 %v442, %v490
        %v499 = vmul.f32 %v443, %v491
        %v500 = vmul.f32 %v444, %v492
        %v501 = vmul.f32 %v445, %v493
        %v502 = vmul.f32 %v446, %v494
        %v503 = vmul.f32 %v447, %v495
        %v504 = vmul.f32 %v448, %v496
        %v505 = vmul.f32 %v449, %v497
        %v507 = vlaneseq
        %v508 = vshrl.u32 %v507, 7
        %v509 = vsub.s32 0, %v508
        %v510 = vrot.slane %v398, %v509
        %v512 = vmul.f32 %v498, %v510
        %v513 = vmul.f32 %v499, %v510
        %v514 = vmul.f32 %v500, %v510
        %v515 = vmul.f32 %v501, %v510
        %v516 = vmul.f32 %v502, %v510
        %v517 = vmul.f32 %v503, %v510
        %v518 = vmul.f32 %v504, %v510
        %v519 = vmul.f32 %v505, %v510
        %v521 = vlaneseq
        %v522 = vshrl.u32 %v521, 7
        %v523 = vsub.s32 0, %v522
        %v524 = vrot.slane %v399, %v523
        %v526 = vadd.f32 %v512, %v524
        %v527 = vadd.f32 %v513, %v524
        %v528 = vadd.f32 %v514, %v524
        %v529 = vadd.f32 %v515, %v524
        %v530 = vadd.f32 %v516, %v524
        %v531 = vadd.f32 %v517, %v524
        %v532 = vadd.f32 %v518, %v524
        %v533 = vadd.f32 %v519, %v524
        %v535 = vlaneseq
        %v536 = vshrl.u32 %v535, 7
        %v537 = vsub.s32 0, %v536
        %v538 = vrot.slane %v416, %v537
        %540 = vmatprep.subr.mxu0 0.0
        %541 = vmatpush1.msra.mxu0 %v400
        %542 = vmatprep.subr.mxu0 0.0
        %543 = vmatpush1.msra.mxu0 %v401
        %544 = vmatprep.subr.mxu0 0.0
        %545 = vmatpush1.msra.mxu0 %v402
        %546 = vmatprep.subr.mxu0 0.0
        %547 = vmatpush1.msra.mxu0 %v403
        %548 = vmatprep.subr.mxu0 0.0
        %549 = vmatpush1.msra.mxu0 %v404
        %550 = vmatprep.subr.mxu0 0.0
        %551 = vmatpush1.msra.mxu0 %v405
        %552 = vmatprep.subr.mxu0 0.0
        %553 = vmatpush1.msra.mxu0 %v406
        %554 = vmatprep.subr.mxu0 0.0
        %555 = vmatpush1.msra.mxu0 %v407
        %556 = vmatprep.subr.mxu0 0.0
        %557 = vmatpush1.msra.mxu0 %v408
        %558 = vmatprep.subr.mxu0 0.0
        %559 = vmatpush1.msra.mxu0 %v409
        %560 = vmatprep.subr.mxu0 0.0
        %561 = vmatpush1.msra.mxu0 %v410
        %562 = vmatprep.subr.mxu0 0.0
        %563 = vmatpush1.msra.mxu0 %v411
        %564 = vmatprep.subr.mxu0 0.0
        %565 = vmatpush1.msra.mxu0 %v412
        %566 = vmatprep.subr.mxu0 0.0
        %567 = vmatpush1.msra.mxu0 %v413
        %568 = vmatprep.subr.mxu0 0.0
        %569 = vmatpush1.msra.mxu0 %v414
        %570 = vmatprep.subr.mxu0 0.0
        %571 = vmatpush1.msra.mxu0 %v415
        %572 = vmatprep.subr.mxu0 0.0
        %573 = vmatpush1.msra.mxu0 0.0
        %574 = vmatprep.subr.mxu0 0.0
        %575 = vmatpush1.msra.mxu0 0.0
        %576 = vmatprep.subr.mxu0 0.0
        %577 = vmatpush1.msra.mxu0 0.0
        %578 = vmatprep.subr.mxu0 0.0
        %579 = vmatpush1.msra.mxu0 0.0
        %580 = vmatprep.subr.mxu0 0.0
        %581 = vmatpush1.msra.mxu0 0.0
        %582 = vmatprep.subr.mxu0 0.0
        %583 = vmatpush1.msra.mxu0 0.0
        %584 = vmatprep.subr.mxu0 0.0
        %585 = vmatpush1.msra.mxu0 0.0
        %586 = vmatprep.subr.mxu0 0.0
        %587 = vmatpush1.msra.mxu0 0.0
        %588 = vmatprep.subr.mxu0 0.0
        %589 = vmatpush1.msra.mxu0 0.0
        %590 = vmatprep.subr.mxu0 0.0
        %591 = vmatpush1.msra.mxu0 0.0
        %592 = vmatprep.subr.mxu0 0.0
        %593 = vmatpush1.msra.mxu0 0.0
        %594 = vmatprep.subr.mxu0 0.0
        %595 = vmatpush1.msra.mxu0 0.0
        %596 = vmatprep.subr.mxu0 0.0
        %597 = vmatpush1.msra.mxu0 0.0
        %598 = vmatprep.subr.mxu0 0.0
        %599 = vmatpush1.msra.mxu0 0.0
        %600 = vmatprep.subr.mxu0 0.0
        %601 = vmatpush1.msra.mxu0 0.0
        %602 = vmatprep.subr.mxu0 0.0
        %603 = vmatpush1.msra.mxu0 0.0
        %604 = vmatprep.mubr.f32.mxu0 0.0
        %605 = vmatmul.mubr.f32.gmra.mrb[0].mxu0 %v526
        %v606 = vpop.f32.mrb[0].mxu0
        %v607 = vadd.f32 %v538, %v606
        %v608 = vpop.f32.mrb[0].mxu0
        %609 = vmatprep.mubr.f32.mxu0 0.0
        %610 = vmatmul.mubr.f32.gmra.mrb[0].mxu0 %v527
        %v611 = vpop.f32.mrb[0].mxu0
        %v612 = vadd.f32 %v538, %v611
        %v613 = vpop.f32.mrb[0].mxu0
        %614 = vmatprep.mubr.f32.mxu0 0.0
        %615 = vmatmul.mubr.f32.gmra.mrb[0].mxu0 %v528
        %v616 = vpop.f32.mrb[0].mxu0
        %v617 = vadd.f32 %v538, %v616
        %v618 = vpop.f32.mrb[0].mxu0
        %619 = vmatprep.mubr.f32.mxu0 0.0
        %620 = vmatmul.mubr.f32.gmra.mrb[0].mxu0 %v529
        %v621 = vpop.f32.mrb[0].mxu0
        %v622 = vadd.f32 %v538, %v621
        %v623 = vpop.f32.mrb[0].mxu0
        %624 = vmatprep.mubr.f32.mxu0 0.0
        %625 = vmatmul.mubr.f32.gmra.mrb[0].mxu0 %v530
        %v626 = vpop.f32.mrb[0].mxu0
        %v627 = vadd.f32 %v538, %v626
        %v628 = vpop.f32.mrb[0].mxu0
        %629 = vmatprep.mubr.f32.mxu0 0.0
        %630 = vmatmul.mubr.f32.gmra.mrb[0].mxu0 %v531
        %v631 = vpop.f32.mrb[0].mxu0
        %v632 = vadd.f32 %v538, %v631
        %v633 = vpop.f32.mrb[0].mxu0
        %634 = vmatprep.mubr.f32.mxu0 0.0
        %635 = vmatmul.mubr.f32.gmra.mrb[0].mxu0 %v532
        %v636 = vpop.f32.mrb[0].mxu0
        %v637 = vadd.f32 %v538, %v636
        %v638 = vpop.f32.mrb[0].mxu0
        %639 = vmatprep.mubr.f32.mxu0 0.0
        %640 = vmatmul.mubr.f32.gmra.mrb[0].mxu0 %v533
        %v641 = vpop.f32.mrb[0].mxu0
        %v642 = vadd.f32 %v538, %v641
        %v643 = vpop.f32.mrb[0].mxu0
        %644 = vdwg.mxu0
        %645 = vst [vmem:[%s354] sm:$0xff] %v607
        %646 = vst [vmem:[%s354 + $0x8] sm:$0xff] %v612
        %647 = vst [vmem:[%s354 + $0x10] sm:$0xff] %v617
        %648 = vst [vmem:[%s354 + $0x18] sm:$0xff] %v622
        %649 = vst [vmem:[%s354 + $0x20] sm:$0xff] %v627
        %650 = vst [vmem:[%s354 + $0x28] sm:$0xff] %v632
        %651 = vst [vmem:[%s354 + $0x30] sm:$0xff] %v637
        %652 = vst [vmem:[%s354 + $0x38] sm:$0xff] %v642
        %s653 = sand.u32 %s175, 1
        %s654 = scalar_lea.sflag [#allocation4], %s653
        %s655 = sand.u32 %s175, 1
        %s656 = smul.addr %s655, 64
        %s657 = scalar_lea.vmem [#allocation8], %s656
        %s658 = sand.u32 %s201, 1
        %s659 = scalar_lea.sflag [#allocation10], %s658
        %s660 = sand.u32 %s201, 1
        %s661 = smul.addr %s660, 64
        %s662 = scalar_lea.vmem [#allocation9], %s661
        // Predicated region
        $region57: #{tpu_custom_call.1} parent=43 // pred_check
          %p663 = pneg %p185
        $region58: #{tpu_custom_call.1} parent=43 // pred_check_branch
          %665 = sbr.rel (%p663) target = $region60
        $region59: #{tpu_custom_call.1} parent=43 // pred_region
          %s666 = smul.u32 8, %s31
          %s668 = ssub.s32 1024, 1024
          %669 = vsyncadd %s654, %s668
          %s670 = smul.addr %s666, 128
          %s671 = scalar_lea.hbm %s6, %s670
          %s672 = sshll.u32 %s657, 4
          %s673 = int_to_ptr.vmem [resolvable:$true] %s672
          %678 = dma.vmem_to_hbm [thread:$0]  %s673, 1024, %s671, %s654, 128, 128, 8
        $region60: #{tpu_custom_call.1} parent=43 // pred_fallthru
          _
        // Predicated region
        $region61: #{tpu_custom_call.1} parent=43 // pred_check
          %p679 = pneg %p211
        $region62: #{tpu_custom_call.1} parent=43 // pred_check_branch
          %681 = sbr.rel (%p679) target = $region64
        $region63: #{tpu_custom_call.1} parent=43 // pred_region
          %s682 = smul.u32 8, %s31
          %s684 = ssub.s32 1024, 1024
          %685 = vsyncadd %s659, %s684
          %s686 = smul.addr %s682, 128
          %s687 = scalar_lea.hbm %s7, %s686
          %s688 = sshll.u32 %s662, 4
          %s689 = int_to_ptr.vmem [resolvable:$true] %s688
          %694 = dma.vmem_to_hbm [thread:$0]  %s689, 1024, %s687, %s659, 128, 128, 8
        $region64: #{tpu_custom_call.1} parent=43 // pred_fallthru
          _
      $region44: #{tpu_custom_call.1} parent=5 // pred_fallthru
        _
      %p695 = scmp.le.s32.totalorder 2, %s26
      // Predicated region
      $region65: #{tpu_custom_call.1} parent=5 // pred_check
        %p696 = pneg %p695
      $region66: #{tpu_custom_call.1} parent=5 // pred_check_branch
        %698 = sbr.rel (%p696) target = $region68
      $region67: #{tpu_custom_call.1} parent=5 // pred_region
        %s699 = ssub.s32 %s26, 2
        // Predicated region
        $region69: #{tpu_custom_call.1} parent=67 // pred_check
          %p700 = pneg %p191
        $region70: #{tpu_custom_call.1} parent=67 // pred_check_branch
          %702 = sbr.rel (%p700) target = $region72
        $region71: #{tpu_custom_call.1} parent=67 // pred_region
          %s703 = sand.u32 %s176, 1
          %s704 = scalar_lea.sflag [#allocation4], %s703
          %s705 = sand.u32 %s176, 1
          %s706 = smul.addr %s705, 64
          %s707 = scalar_lea.vmem [#allocation8], %s706
          %708 = dma.done %s704, 1024
        $region72: #{tpu_custom_call.1} parent=67 // pred_fallthru
          _
        // Predicated region
        $region73: #{tpu_custom_call.1} parent=67 // pred_check
          %p709 = pneg %p217
        $region74: #{tpu_custom_call.1} parent=67 // pred_check_branch
          %711 = sbr.rel (%p709) target = $region76
        $region75: #{tpu_custom_call.1} parent=67 // pred_region
          %s712 = sand.u32 %s202, 1
          %s713 = scalar_lea.sflag [#allocation10], %s712
          %s714 = sand.u32 %s202, 1
          %s715 = smul.addr %s714, 64
          %s716 = scalar_lea.vmem [#allocation9], %s715
          %717 = dma.done %s713, 1024
        $region76: #{tpu_custom_call.1} parent=67 // pred_fallthru
          _
      $region68: #{tpu_custom_call.1} parent=5 // pred_fallthru
        _
    $region6: #{tpu_custom_call.1} parent=1 // loop_footer
      %s30 = sadd.s32 1, %s26
    $region7: #{tpu_custom_call.1} parent=1 // loop_footer_branch
      %25 = sbr.rel target = $region3
    $region8: #{tpu_custom_call.1} parent=1 // loop_exit
      _
    %718 = vsyncpa [#allocation3], 1
    %s719 = scalar_lea.sflag [#allocation3], 1
    %720 = vsyncpa %s719, 1
    %721 = vsyncpa [#allocation6], 1
    %s722 = scalar_lea.sflag [#allocation6], 1
    %723 = vsyncpa %s722, 1
    %724 = vsyncpa [#allocation4], 1
    %s725 = scalar_lea.sflag [#allocation4], 1
    %726 = vsyncpa %s725, 1
    %727 = vsyncpa [#allocation10], 1
    %s728 = scalar_lea.sflag [#allocation10], 1
    %729 = vsyncpa %s728, 1

</llo_original>
